<compile_context>
chip_gen: v7x
topology: tpu7x:2x2x1
jax: 0.10.0
libtpu: 0.0.40
codegen_flags: <defaults>
</compile_context>

<pallas_src>
from functools import partial

import jax
import jax.numpy as jnp
from jax.experimental import pallas as pl
from jax.experimental.pallas import tpu as pltpu


# Raise for real CLIP-L sizes (e.g. 64<<20 on v5e/v6e; re-derive for v7x's
# 64 MiB physical VMEM).  None keeps the backend default for the small demo.
VMEM_LIMIT_BYTES = None
LN_EPS = 1e-5


def _cparams(dim_sems):
    kwargs = dict(dimension_semantics=dim_sems)
    if VMEM_LIMIT_BYTES is not None:
        kwargs["vmem_limit_bytes"] = VMEM_LIMIT_BYTES
    return pltpu.CompilerParams(**kwargs)


def _layernorm_f32(x, g, b, eps):
    mean = jnp.mean(x, axis=-1, keepdims=True)
    var = jnp.mean((x - mean) ** 2, axis=-1, keepdims=True)
    return (x - mean) * jax.lax.rsqrt(var + eps) * g + b


# ----------------------------- Pallas kernels -----------------------------

def _embed_preln_kernel(p_ref, w_ref, pos_ref, g_ref, b_ref, o_ref, *, eps):
    # p_ref: (1, S, Cpp) im2col patches with a zero row prepended for CLS
    # w_ref: (Cpp, D) bf16   pos_ref: (S, D) f32 (pos emb with CLS row += class_emb)
    emb = jnp.dot(p_ref[0].astype(jnp.bfloat16), w_ref[...],
                  preferred_element_type=jnp.float32)            # (S, D) f32
    x = emb + pos_ref[...]
    o_ref[0] = _layernorm_f32(x, g_ref[...], b_ref[...], eps).astype(o_ref.dtype)


def embed_preln(patches, w_bf16, pos_cls, g, b, out_dtype):
    B, S, Cpp = patches.shape
    D = w_bf16.shape[1]
    return pl.pallas_call(
        partial(_embed_preln_kernel, eps=LN_EPS),
        out_shape=jax.ShapeDtypeStruct((B, S, D), out_dtype),
        grid=(B,),
        in_specs=[
            pl.BlockSpec((1, S, Cpp), lambda bi: (bi, 0, 0)),
            pl.BlockSpec((Cpp, D), lambda bi: (0, 0)),
            pl.BlockSpec((S, D), lambda bi: (0, 0)),
            pl.BlockSpec((1, D), lambda bi: (0, 0)),
            pl.BlockSpec((1, D), lambda bi: (0, 0)),
        ],
        out_specs=pl.BlockSpec((1, S, D), lambda bi: (bi, 0, 0)),
        compiler_params=_cparams(("parallel",)),
    )(patches, w_bf16, pos_cls, g, b)


def _attn_block_kernel(x_ref, g_ref, b_ref, wq_ref, bq_ref, wk_ref, bk_ref,
                       wv_ref, bv_ref, wo_ref, bo_ref, o_ref, h_scr, acc_scr,
                       *, eps, scale, hp, dh):
    # Fused: LN1 -> Q/K/V projections (for this head-pack) -> per-head softmax
    # attention -> partial out-projection accumulated over head-packs -> +residual.
    hi = pl.program_id(1)

    @pl.when(hi == 0)
    def _():
        x = x_ref[0].astype(jnp.float32)
        h_scr[...] = _layernorm_f32(x, g_ref[...], b_ref[...], eps)
        acc_scr[...] = x + bo_ref[...]          # residual + out-proj bias (once)

    hb = h_scr[...].astype(jnp.bfloat16)
    # wq/wk/wv blocks are (D, hp*dh); bq/bk/bv are (1, hp*dh).  Scale folded
    # into q (applied after the bias, matching CLIPAttention).
    q = (jnp.dot(hb, wq_ref[...], preferred_element_type=jnp.float32)
         + bq_ref[...]) * scale
    k = jnp.dot(hb, wk_ref[...], preferred_element_type=jnp.float32) + bk_ref[...]
    v = jnp.dot(hb, wv_ref[...], preferred_element_type=jnp.float32) + bv_ref[...]

    outs = []
    for h in range(hp):
        sl = slice(h * dh, (h + 1) * dh)
        qh = q[:, sl].astype(jnp.bfloat16)
        kh = k[:, sl].astype(jnp.bfloat16)
        vh = v[:, sl].astype(jnp.bfloat16)
        # scores = qh @ kh^T  (contract last dims; no explicit transpose)
        s = jax.lax.dot_general(qh, kh, (((1,), (1,)), ((), ())),
                                preferred_element_type=jnp.float32)   # (S, S) f32
        s = s - jnp.max(s, axis=-1, keepdims=True)
        p = jnp.exp(s)
        p = p * pl.reciprocal(jnp.sum(p, axis=-1, keepdims=True), approx=True)
        outs.append(jnp.dot(p.astype(jnp.bfloat16), vh,
                            preferred_element_type=jnp.float32))      # (S, dh)
    o = outs[0] if hp == 1 else jnp.concatenate(outs, axis=-1)        # (S, hp*dh)

    # partial out-projection for this head-pack, accumulated in f32 VMEM
    acc_scr[...] += jnp.dot(o.astype(jnp.bfloat16), wo_ref[...],
                            preferred_element_type=jnp.float32)

    @pl.when(hi == pl.num_programs(1) - 1)
    def _():
        o_ref[0] = acc_scr[...].astype(o_ref.dtype)


def _head_pack(nh, dh, D):
    """Heads per grid step so the lane width is 128-friendly or == D."""
    if dh % 128 == 0:
        return 1
    if 128 % dh == 0 and nh % (128 // dh) == 0:
        return 128 // dh
    return nh


def attn_block(x, g, b, wq, bq, wk, bk, wv, bv, wo, bo, *, heads, scale):
    B, S, D = x.shape
    dh = D // heads
    hp = _head_pack(heads, dh, D)
    hpd = hp * dh
    n_packs = D // hpd
    row = lambda bi, hi: (bi, 0, 0)
    vec = lambda bi, hi: (0, 0)
    colblk = lambda bi, hi: (0, hi)   # (D, hpd) column slice of Wq/Wk/Wv
    rowblk = lambda bi, hi: (hi, 0)   # (hpd, D) row slice of Wo
    return pl.pallas_call(
        partial(_attn_block_kernel, eps=LN_EPS, scale=scale, hp=hp, dh=dh),
        out_shape=jax.ShapeDtypeStruct((B, S, D), x.dtype),
        grid=(B, n_packs),
        in_specs=[
            pl.BlockSpec((1, S, D), row),
            pl.BlockSpec((1, D), vec), pl.BlockSpec((1, D), vec),
            pl.BlockSpec((D, hpd), colblk), pl.BlockSpec((1, hpd), colblk),
            pl.BlockSpec((D, hpd), colblk), pl.BlockSpec((1, hpd), colblk),
            pl.BlockSpec((D, hpd), colblk), pl.BlockSpec((1, hpd), colblk),
            pl.BlockSpec((hpd, D), rowblk), pl.BlockSpec((1, D), vec),
        ],
        out_specs=pl.BlockSpec((1, S, D), row),
        scratch_shapes=[pltpu.VMEM((S, D), jnp.float32),
                        pltpu.VMEM((S, D), jnp.float32)],
        compiler_params=_cparams(("parallel", "arbitrary")),
    )(x, g, b, wq, bq, wk, bk, wv, bv, wo, bo)


def _ln_mlp_kernel(x_ref, g_ref, b_ref, w1_ref, b1_ref, w2_ref, b2_ref,
                   o_ref, h_scr, acc_scr, *, eps):
    # Fused LN2 -> fc1 -> quick_gelu -> fc2 -> +residual, with the inter dim
    # tiled as a reduction grid axis (f32 accumulator in VMEM).
    i = pl.program_id(1)

    @pl.when(i == 0)
    def _():
        x = x_ref[0].astype(jnp.float32)
        h_scr[...] = _layernorm_f32(x, g_ref[...], b_ref[...], eps)
        acc_scr[...] = x + b2_ref[...]          # residual + fc2 bias (added once)

    hm = jnp.dot(h_scr[...].astype(jnp.bfloat16), w1_ref[...],
                 preferred_element_type=jnp.float32) + b1_ref[...]
    hm = hm * jax.nn.sigmoid(1.702 * hm)        # quick_gelu, fp32
    acc_scr[...] += jnp.dot(hm.astype(jnp.bfloat16), w2_ref[...],
                            preferred_element_type=jnp.float32)

    @pl.when(i == pl.num_programs(1) - 1)
    def _():
        o_ref[0] = acc_scr[...].astype(o_ref.dtype)


def ln_mlp_residual(x, g, b, w1, b1, w2, b2):
    B, S, D = x.shape
    I = w1.shape[1]
    TI = I if (I <= 1024 or I % 1024 != 0) else 1024   # inter tile (128-aligned)
    NI = I // TI
    return pl.pallas_call(
        partial(_ln_mlp_kernel, eps=LN_EPS),
        out_shape=jax.ShapeDtypeStruct((B, S, D), x.dtype),
        grid=(B, NI),
        in_specs=[
            pl.BlockSpec((1, S, D), lambda bi, ii: (bi, 0, 0)),
            pl.BlockSpec((1, D), lambda bi, ii: (0, 0)),
            pl.BlockSpec((1, D), lambda bi, ii: (0, 0)),
            pl.BlockSpec((D, TI), lambda bi, ii: (0, ii)),
            pl.BlockSpec((1, TI), lambda bi, ii: (0, ii)),
            pl.BlockSpec((TI, D), lambda bi, ii: (ii, 0)),
            pl.BlockSpec((1, D), lambda bi, ii: (0, 0)),
        ],
        out_specs=pl.BlockSpec((1, S, D), lambda bi, ii: (bi, 0, 0)),
        scratch_shapes=[pltpu.VMEM((S, D), jnp.float32),
                        pltpu.VMEM((S, D), jnp.float32)],
        compiler_params=_cparams(("parallel", "arbitrary")),
    )(x, g, b, w1, b1, w2, b2)


# --------------------------- model (glue in JAX) ---------------------------

def init_params(key, *, channels, patch, hidden, heads, inter, n_layers, seq):
    def nrm(k, shape, scale=0.02):
        return (scale * jax.random.normal(k, shape)).astype(jnp.float32)

    keys = iter(jax.random.split(key, 8 + 12 * n_layers))
    params = {
        # conv weight [D, C, p, p] stored as matmul weight [C*p*p, D]
        'patch_w': nrm(next(keys), (channels * patch * patch, hidden)),
        'class_emb': nrm(next(keys), (hidden,)),
        'pos_emb': nrm(next(keys), (seq, hidden)),
        'pre_ln_g': jnp.ones((hidden,), jnp.float32),
        'pre_ln_b': jnp.zeros((hidden,), jnp.float32),
        'layers': [],
    }
    for _ in range(n_layers):
        params['layers'].append({
            'ln1_g': jnp.ones((hidden,), jnp.float32),
            'ln1_b': jnp.zeros((hidden,), jnp.float32),
            'wq': nrm(next(keys), (hidden, hidden)), 'bq': nrm(next(keys), (hidden,)),
            'wk': nrm(next(keys), (hidden, hidden)), 'bk': nrm(next(keys), (hidden,)),
            'wv': nrm(next(keys), (hidden, hidden)), 'bv': nrm(next(keys), (hidden,)),
            'wo': nrm(next(keys), (hidden, hidden)), 'bo': nrm(next(keys), (hidden,)),
            'ln2_g': jnp.ones((hidden,), jnp.float32),
            'ln2_b': jnp.zeros((hidden,), jnp.float32),
            'w1': nrm(next(keys), (hidden, inter)), 'b1': nrm(next(keys), (inter,)),
            'w2': nrm(next(keys), (inter, hidden)), 'b2': nrm(next(keys), (hidden,)),
        })
    return params


def clip_vision_tower_forward(images, params, cfg):
    """images: NCHW float32 [B, C, H, W] -> selected features [B, tokens, D]."""
    B, C, H, W = images.shape
    p, D, nh = cfg['patch'], cfg['hidden'], cfg['heads']
    nH, nW = H // p, W // p
    nP = nH * nW
    S = nP + 1
    dh = D // nh
    scale = dh ** -0.5
    act_dt = jnp.float32      # activation (hidden-state) dtype
    wdt = jnp.bfloat16        # matmul weight dtype (MXU inputs); accum stays f32

    # --- im2col once (conv stride == kernel == patch) + zero row for CLS ---
    # TODO(synk): accept NHWC input to make the C*p*p contraction contiguous.
    patches = images.reshape(B, C, nH, p, nW, p).transpose(0, 2, 4, 1, 3, 5)
    patches = patches.reshape(B, nP, C * p * p).astype(jnp.float32)
    patches = jnp.concatenate(
        [jnp.zeros((B, 1, C * p * p), patches.dtype), patches], axis=1)  # [B,S,Cpp]

    # pos embedding with the class embedding folded into row 0, so the embed
    # kernel is a single matmul+add+LayerNorm (no in-kernel concat, no bias).
    pos_cls = params['pos_emb'].astype(jnp.float32).at[0].add(
        params['class_emb'].astype(jnp.float32))

    x = embed_preln(patches,
                    params['patch_w'].astype(wdt),
                    pos_cls,
                    params['pre_ln_g'].reshape(1, D),
                    params['pre_ln_b'].reshape(1, D),
                    act_dt)                                          # [B, S, D]

    # ---- only run the encoder layers needed for hidden_states[select_layer] ----
    n_layers = len(params['layers'])
    sel = cfg['select_layer']
    idx = sel if sel >= 0 else (n_layers + 1 + sel)
    idx = max(0, min(idx, n_layers))

    for lyr in params['layers'][:idx]:
        # fused LN1 + QKV + attention + out-projection + residual
        x = attn_block(x,
                       lyr['ln1_g'].reshape(1, D), lyr['ln1_b'].reshape(1, D),
                       lyr['wq'].astype(wdt), lyr['bq'].reshape(1, D),
                       lyr['wk'].astype(wdt), lyr['bk'].reshape(1, D),
                       lyr['wv'].astype(wdt), lyr['bv'].reshape(1, D),
                       lyr['wo'].astype(wdt), lyr['bo'].reshape(1, D),
                       heads=nh, scale=scale)
        # fused LN2 + MLP(quick_gelu) + residual add
        x = ln_mlp_residual(x,
                            lyr['ln2_g'].reshape(1, D), lyr['ln2_b'].reshape(1, D),
                            lyr['w1'].astype(wdt), lyr['b1'].reshape(1, -1),
                            lyr['w2'].astype(wdt), lyr['b2'].reshape(1, D))

    # ---- feature_select ----
    select_feature = cfg.get('select_feature', 'patch')
    if select_feature == 'patch':
        feats = x[:, 1:, :]
    elif select_feature == 'cls_patch':
        feats = x
    else:
        raise ValueError(f'Unexpected select feature: {select_feature}')
    return feats.astype(images.dtype)


# --------------------------------- main ------------------------------------

if __name__ == "__main__":
    cfg = dict(
        channels=3, image_size=16, patch=8,
        hidden=32, heads=4, inter=64, n_layers=3,
        select_layer=-2,          # mm_vision_select_layer
        select_feature='patch',
    )
    seq = (cfg['image_size'] // cfg['patch']) ** 2 + 1      # num_patches + CLS

    key = jax.random.PRNGKey(0)
    k_img, k_par = jax.random.split(key)
    images = jax.random.normal(
        k_img, (2, cfg['channels'], cfg['image_size'], cfg['image_size']),
        dtype=jnp.float32)                                   # NCHW, like PyTorch

    params = init_params(
        k_par, channels=cfg['channels'], patch=cfg['patch'],
        hidden=cfg['hidden'], heads=cfg['heads'], inter=cfg['inter'],
        n_layers=cfg['n_layers'], seq=seq)

    fwd = jax.jit(lambda imgs, prms: clip_vision_tower_forward(imgs, prms, cfg))
    feats = fwd(images, params)
    feats = jax.block_until_ready(feats)

    assert feats.shape == (2, (cfg['image_size'] // cfg['patch']) ** 2, cfg['hidden'])
    assert feats.dtype == images.dtype
    print("KERNEL_OK")
</pallas_src>

<mosaic_0001>
module attributes {stable_mosaic.version = 11 : i64} {
  func.func @_embed_preln_kernel(%arg0: i32, %arg1: memref<1x5x192xf32, #tpu.memory_space<vmem>>, %arg2: memref<192x32xbf16, #tpu.memory_space<vmem>>, %arg3: memref<5x32xf32, #tpu.memory_space<vmem>>, %arg4: memref<1x32xf32, #tpu.memory_space<vmem>>, %arg5: memref<1x32xf32, #tpu.memory_space<vmem>>, %arg6: memref<1x5x32xf32, #tpu.memory_space<vmem>>) attributes {dimension_semantics = [#tpu.dimension_semantics<parallel>], iteration_bounds = array<i64: 2>, scalar_prefetch = 0 : i64, scratch_operands = 0 : i64, tpu.core_type = #tpu.core_type<tc>, window_params = [{transform_indices = @transform_0, window_bounds = array<i64: 1, 5, 192>}, {pipeline_mode = #tpu.pipeline_mode<synchronous>, transform_indices = @transform_1, window_bounds = array<i64: 192, 32>}, {pipeline_mode = #tpu.pipeline_mode<synchronous>, transform_indices = @transform_2, window_bounds = array<i64: 5, 32>}, {pipeline_mode = #tpu.pipeline_mode<synchronous>, transform_indices = @transform_3, window_bounds = array<i64: 1, 32>}, {pipeline_mode = #tpu.pipeline_mode<synchronous>, transform_indices = @transform_4, window_bounds = array<i64: 1, 32>}, {transform_indices = @transform_5, window_bounds = array<i64: 1, 5, 32>}]} {
    %c0 = arith.constant 0 : index
    %c0_0 = arith.constant 0 : index
    %c0_1 = arith.constant 0 : index
    %0 = vector.load %arg1[%c0, %c0_0, %c0_1] : memref<1x5x192xf32, #tpu.memory_space<vmem>>, vector<1x5x192xf32>
    %1 = vector.shape_cast %0 : vector<1x5x192xf32> to vector<5x192xf32>
    %2 = arith.truncf %1 : vector<5x192xf32> to vector<5x192xbf16>
    %c0_2 = arith.constant 0 : index
    %c0_3 = arith.constant 0 : index
    %3 = vector.load %arg2[%c0_2, %c0_3] : memref<192x32xbf16, #tpu.memory_space<vmem>>, vector<192x32xbf16>
    %cst = arith.constant dense<0.000000e+00> : vector<5x32xf32>
    %4 = tpu.matmul %2, %3, %cst {dimension_numbers = #tpu.dot_dimension_numbers<[1], [0], [0], [1], [0, 0, 1, 1], [], []>} : vector<5x192xbf16>, vector<192x32xbf16>, vector<5x32xf32> -> vector<5x32xf32>
    %c0_4 = arith.constant 0 : index
    %c0_5 = arith.constant 0 : index
    %5 = vector.load %arg3[%c0_4, %c0_5] : memref<5x32xf32, #tpu.memory_space<vmem>>, vector<5x32xf32>
    %6 = arith.addf %4, %5 : vector<5x32xf32>
    %c0_6 = arith.constant 0 : index
    %c0_7 = arith.constant 0 : index
    %7 = vector.load %arg4[%c0_6, %c0_7] : memref<1x32xf32, #tpu.memory_space<vmem>>, vector<1x32xf32>
    %c0_8 = arith.constant 0 : index
    %c0_9 = arith.constant 0 : index
    %8 = vector.load %arg5[%c0_8, %c0_9] : memref<1x32xf32, #tpu.memory_space<vmem>>, vector<1x32xf32>
    %cst_10 = arith.constant dense<0.000000e+00> : vector<5xf32>
    %9 = vector.multi_reduction <add>, %6, %cst_10 [1] : vector<5x32xf32> to vector<5xf32>
    %10 = vector.shape_cast %9 : vector<5xf32> to vector<5x1xf32>
    %cst_11 = arith.constant 3.200000e+01 : f32
    %11 = vector.broadcast %cst_11 : f32 to vector<5x1xf32>
    %12 = arith.divf %10, %11 : vector<5x1xf32>
    %13 = vector.broadcast %12 : vector<5x1xf32> to vector<5x32xf32>
    %14 = arith.subf %6, %13 : vector<5x32xf32>
    %15 = arith.mulf %14, %14 : vector<5x32xf32>
    %cst_12 = arith.constant dense<0.000000e+00> : vector<5xf32>
    %16 = vector.multi_reduction <add>, %15, %cst_12 [1] : vector<5x32xf32> to vector<5xf32>
    %17 = vector.shape_cast %16 : vector<5xf32> to vector<5x1xf32>
    %cst_13 = arith.constant 3.200000e+01 : f32
    %18 = vector.broadcast %cst_13 : f32 to vector<5x1xf32>
    %19 = arith.divf %17, %18 : vector<5x1xf32>
    %20 = vector.broadcast %12 : vector<5x1xf32> to vector<5x32xf32>
    %21 = arith.subf %6, %20 : vector<5x32xf32>
    %cst_14 = arith.constant 9.99999974E-6 : f32
    %22 = vector.broadcast %cst_14 : f32 to vector<5x1xf32>
    %23 = arith.addf %19, %22 : vector<5x1xf32>
    %24 = math.rsqrt %23 : vector<5x1xf32>
    %25 = vector.broadcast %24 : vector<5x1xf32> to vector<5x32xf32>
    %26 = arith.mulf %21, %25 : vector<5x32xf32>
    %27 = vector.broadcast %7 : vector<1x32xf32> to vector<5x32xf32>
    %28 = arith.mulf %26, %27 : vector<5x32xf32>
    %29 = vector.broadcast %8 : vector<1x32xf32> to vector<5x32xf32>
    %30 = arith.addf %28, %29 : vector<5x32xf32>
    %c0_15 = arith.constant 0 : index
    %c0_16 = arith.constant 0 : index
    %c0_17 = arith.constant 0 : index
    %31 = vector.load %arg6[%c0_15, %c0_16, %c0_17] : memref<1x5x32xf32, #tpu.memory_space<vmem>>, vector<1x5x32xf32>
    %32 = vector.shape_cast %31 : vector<1x5x32xf32> to vector<5x32xf32>
    %33 = vector.shape_cast %30 : vector<5x32xf32> to vector<1x5x32xf32>
    tpu.vector_store %arg6[%c0_15, %c0_16, %c0_17], %33 {strides = array<i32>} : memref<1x5x32xf32, #tpu.memory_space<vmem>>, vector<1x5x32xf32>,
    return
  }
  func.func @transform_0(%arg0: i32) -> (i32, i32, i32) {
    %c0_i32 = arith.constant 0 : i32
    %c0_i32_0 = arith.constant 0 : i32
    %c0_i32_1 = arith.constant 0 : i32
    return %arg0, %c0_i32, %c0_i32_0 : i32, i32, i32
  }
  func.func @transform_1(%arg0: i32) -> (i32, i32) {
    %c0_i32 = arith.constant 0 : i32
    %c0_i32_0 = arith.constant 0 : i32
    %c0_i32_1 = arith.constant 0 : i32
    return %c0_i32, %c0_i32_0 : i32, i32
  }
  func.func @transform_2(%arg0: i32) -> (i32, i32) {
    %c0_i32 = arith.constant 0 : i32
    %c0_i32_0 = arith.constant 0 : i32
    %c0_i32_1 = arith.constant 0 : i32
    return %c0_i32, %c0_i32_0 : i32, i32
  }
  func.func @transform_3(%arg0: i32) -> (i32, i32) {
    %c0_i32 = arith.constant 0 : i32
    %c0_i32_0 = arith.constant 0 : i32
    %c0_i32_1 = arith.constant 0 : i32
    return %c0_i32, %c0_i32_0 : i32, i32
  }
  func.func @transform_4(%arg0: i32) -> (i32, i32) {
    %c0_i32 = arith.constant 0 : i32
    %c0_i32_0 = arith.constant 0 : i32
    %c0_i32_1 = arith.constant 0 : i32
    return %c0_i32, %c0_i32_0 : i32, i32
  }
  func.func @transform_5(%arg0: i32) -> (i32, i32, i32) {
    %c0_i32 = arith.constant 0 : i32
    %c0_i32_0 = arith.constant 0 : i32
    %c0_i32_1 = arith.constant 0 : i32
    return %arg0, %c0_i32, %c0_i32_0 : i32, i32, i32
  }
}

module attributes {stable_mosaic.version = 11 : i64} {
  func.func @_attn_block_kernel(%arg0: i32, %arg1: i32, %arg2: memref<1x5x32xf32, #tpu.memory_space<vmem>>, %arg3: memref<1x32xf32, #tpu.memory_space<vmem>>, %arg4: memref<1x32xf32, #tpu.memory_space<vmem>>, %arg5: memref<32x32xbf16, #tpu.memory_space<vmem>>, %arg6: memref<1x32xf32, #tpu.memory_space<vmem>>, %arg7: memref<32x32xbf16, #tpu.memory_space<vmem>>, %arg8: memref<1x32xf32, #tpu.memory_space<vmem>>, %arg9: memref<32x32xbf16, #tpu.memory_space<vmem>>, %arg10: memref<1x32xf32, #tpu.memory_space<vmem>>, %arg11: memref<32x32xbf16, #tpu.memory_space<vmem>>, %arg12: memref<1x32xf32, #tpu.memory_space<vmem>>, %arg13: memref<1x5x32xf32, #tpu.memory_space<vmem>>, %arg14: memref<5x32xf32, #tpu.memory_space<vmem>>, %arg15: memref<5x32xf32, #tpu.memory_space<vmem>>) attributes {dimension_semantics = [#tpu.dimension_semantics<parallel>, #tpu.dimension_semantics<arbitrary>], iteration_bounds = array<i64: 2, 1>, scalar_prefetch = 0 : i64, scratch_operands = 2 : i64, tpu.core_type = #tpu.core_type<tc>, window_params = [{transform_indices = @transform_0, window_bounds = array<i64: 1, 5, 32>}, {pipeline_mode = #tpu.pipeline_mode<synchronous>, transform_indices = @transform_1, window_bounds = array<i64: 1, 32>}, {pipeline_mode = #tpu.pipeline_mode<synchronous>, transform_indices = @transform_2, window_bounds = array<i64: 1, 32>}, {transform_indices = @transform_3, window_bounds = array<i64: 32, 32>}, {transform_indices = @transform_4, window_bounds = array<i64: 1, 32>}, {transform_indices = @transform_5, window_bounds = array<i64: 32, 32>}, {transform_indices = @transform_6, window_bounds = array<i64: 1, 32>}, {transform_indices = @transform_7, window_bounds = array<i64: 32, 32>}, {transform_indices = @transform_8, window_bounds = array<i64: 1, 32>}, {transform_indices = @transform_9, window_bounds = array<i64: 32, 32>}, {pipeline_mode = #tpu.pipeline_mode<synchronous>, transform_indices = @transform_10, window_bounds = array<i64: 1, 32>}, {transform_indices = @transform_11, window_bounds = array<i64: 1, 5, 32>}]} {
    %c0_i32 = arith.constant 0 : i32
    %0 = arith.cmpi eq, %arg1, %c0_i32 : i32
    %1 = arith.extui %0 : i1 to i32
    %c0_i32_0 = arith.constant 0 : i32
    %2 = arith.cmpi ne, %1, %c0_i32_0 : i32
    scf.if %2 {
      %c0_42 = arith.constant 0 : index
      %c0_43 = arith.constant 0 : index
      %c0_44 = arith.constant 0 : index
      %108 = vector.load %arg2[%c0_42, %c0_43, %c0_44] : memref<1x5x32xf32, #tpu.memory_space<vmem>>, vector<1x5x32xf32>
      %109 = vector.shape_cast %108 : vector<1x5x32xf32> to vector<5x32xf32>
      %c0_45 = arith.constant 0 : index
      %c0_46 = arith.constant 0 : index
      %110 = vector.load %arg3[%c0_45, %c0_46] : memref<1x32xf32, #tpu.memory_space<vmem>>, vector<1x32xf32>
      %c0_47 = arith.constant 0 : index
      %c0_48 = arith.constant 0 : index
      %111 = vector.load %arg4[%c0_47, %c0_48] : memref<1x32xf32, #tpu.memory_space<vmem>>, vector<1x32xf32>
      %cst_49 = arith.constant dense<0.000000e+00> : vector<5xf32>
      %112 = vector.multi_reduction <add>, %109, %cst_49 [1] : vector<5x32xf32> to vector<5xf32>
      %113 = vector.shape_cast %112 : vector<5xf32> to vector<5x1xf32>
      %cst_50 = arith.constant 3.200000e+01 : f32
      %114 = vector.broadcast %cst_50 : f32 to vector<5x1xf32>
      %115 = arith.divf %113, %114 : vector<5x1xf32>
      %116 = vector.broadcast %115 : vector<5x1xf32> to vector<5x32xf32>
      %117 = arith.subf %109, %116 : vector<5x32xf32>
      %118 = arith.mulf %117, %117 : vector<5x32xf32>
      %cst_51 = arith.constant dense<0.000000e+00> : vector<5xf32>
      %119 = vector.multi_reduction <add>, %118, %cst_51 [1] : vector<5x32xf32> to vector<5xf32>
      %120 = vector.shape_cast %119 : vector<5xf32> to vector<5x1xf32>
      %cst_52 = arith.constant 3.200000e+01 : f32
      %121 = vector.broadcast %cst_52 : f32 to vector<5x1xf32>
      %122 = arith.divf %120, %121 : vector<5x1xf32>
      %123 = vector.broadcast %115 : vector<5x1xf32> to vector<5x32xf32>
      %124 = arith.subf %109, %123 : vector<5x32xf32>
      %cst_53 = arith.constant 9.99999974E-6 : f32
      %125 = vector.broadcast %cst_53 : f32 to vector<5x1xf32>
      %126 = arith.addf %122, %125 : vector<5x1xf32>
      %127 = math.rsqrt %126 : vector<5x1xf32>
      %128 = vector.broadcast %127 : vector<5x1xf32> to vector<5x32xf32>
      %129 = arith.mulf %124, %128 : vector<5x32xf32>
      %130 = vector.broadcast %110 : vector<1x32xf32> to vector<5x32xf32>
      %131 = arith.mulf %129, %130 : vector<5x32xf32>
      %132 = vector.broadcast %111 : vector<1x32xf32> to vector<5x32xf32>
      %133 = arith.addf %131, %132 : vector<5x32xf32>
      %c0_54 = arith.constant 0 : index
      %c0_55 = arith.constant 0 : index
      %134 = vector.load %arg14[%c0_54, %c0_55] : memref<5x32xf32, #tpu.memory_space<vmem>>, vector<5x32xf32>
      tpu.vector_store %arg14[%c0_54, %c0_55], %133 {strides = array<i32>} : memref<5x32xf32, #tpu.memory_space<vmem>>, vector<5x32xf32>,
      %c0_56 = arith.constant 0 : index
      %c0_57 = arith.constant 0 : index
      %135 = vector.load %arg12[%c0_56, %c0_57] : memref<1x32xf32, #tpu.memory_space<vmem>>, vector<1x32xf32>
      %136 = vector.broadcast %135 : vector<1x32xf32> to vector<5x32xf32>
      %137 = arith.addf %109, %136 : vector<5x32xf32>
      %c0_58 = arith.constant 0 : index
      %c0_59 = arith.constant 0 : index
      %138 = vector.load %arg15[%c0_58, %c0_59] : memref<5x32xf32, #tpu.memory_space<vmem>>, vector<5x32xf32>
      tpu.vector_store %arg15[%c0_58, %c0_59], %137 {strides = array<i32>} : memref<5x32xf32, #tpu.memory_space<vmem>>, vector<5x32xf32>,
    } else {
    }
    %c0 = arith.constant 0 : index
    %c0_1 = arith.constant 0 : index
    %3 = vector.load %arg14[%c0, %c0_1] : memref<5x32xf32, #tpu.memory_space<vmem>>, vector<5x32xf32>
    %4 = arith.truncf %3 : vector<5x32xf32> to vector<5x32xbf16>
    %c0_2 = arith.constant 0 : index
    %c0_3 = arith.constant 0 : index
    %5 = vector.load %arg5[%c0_2, %c0_3] : memref<32x32xbf16, #tpu.memory_space<vmem>>, vector<32x32xbf16>
    %cst = arith.constant dense<0.000000e+00> : vector<5x32xf32>
    %6 = tpu.matmul %4, %5, %cst {dimension_numbers = #tpu.dot_dimension_numbers<[1], [0], [0], [1], [0, 0, 1, 1], [], []>} : vector<5x32xbf16>, vector<32x32xbf16>, vector<5x32xf32> -> vector<5x32xf32>
    %c0_4 = arith.constant 0 : index
    %c0_5 = arith.constant 0 : index
    %7 = vector.load %arg6[%c0_4, %c0_5] : memref<1x32xf32, #tpu.memory_space<vmem>>, vector<1x32xf32>
    %8 = vector.broadcast %7 : vector<1x32xf32> to vector<5x32xf32>
    %9 = arith.addf %6, %8 : vector<5x32xf32>
    %cst_6 = arith.constant 0.353553385 : f32
    %10 = vector.broadcast %cst_6 : f32 to vector<5x32xf32>
    %11 = arith.mulf %9, %10 : vector<5x32xf32>
    %c0_7 = arith.constant 0 : index
    %c0_8 = arith.constant 0 : index
    %12 = vector.load %arg7[%c0_7, %c0_8] : memref<32x32xbf16, #tpu.memory_space<vmem>>, vector<32x32xbf16>
    %cst_9 = arith.constant dense<0.000000e+00> : vector<5x32xf32>
    %13 = tpu.matmul %4, %12, %cst_9 {dimension_numbers = #tpu.dot_dimension_numbers<[1], [0], [0], [1], [0, 0, 1, 1], [], []>} : vector<5x32xbf16>, vector<32x32xbf16>, vector<5x32xf32> -> vector<5x32xf32>
    %c0_10 = arith.constant 0 : index
    %c0_11 = arith.constant 0 : index
    %14 = vector.load %arg8[%c0_10, %c0_11] : memref<1x32xf32, #tpu.memory_space<vmem>>, vector<1x32xf32>
    %15 = vector.broadcast %14 : vector<1x32xf32> to vector<5x32xf32>
    %16 = arith.addf %13, %15 : vector<5x32xf32>
    %c0_12 = arith.constant 0 : index
    %c0_13 = arith.constant 0 : index
    %17 = vector.load %arg9[%c0_12, %c0_13] : memref<32x32xbf16, #tpu.memory_space<vmem>>, vector<32x32xbf16>
    %cst_14 = arith.constant dense<0.000000e+00> : vector<5x32xf32>
    %18 = tpu.matmul %4, %17, %cst_14 {dimension_numbers = #tpu.dot_dimension_numbers<[1], [0], [0], [1], [0, 0, 1, 1], [], []>} : vector<5x32xbf16>, vector<32x32xbf16>, vector<5x32xf32> -> vector<5x32xf32>
    %c0_15 = arith.constant 0 : index
    %c0_16 = arith.constant 0 : index
    %19 = vector.load %arg10[%c0_15, %c0_16] : memref<1x32xf32, #tpu.memory_space<vmem>>, vector<1x32xf32>
    %20 = vector.broadcast %19 : vector<1x32xf32> to vector<5x32xf32>
    %21 = arith.addf %18, %20 : vector<5x32xf32>
    %22 = vector.extract_strided_slice %11 {offsets = [0, 0], sizes = [5, 8], strides = [1, 1]} : vector<5x32xf32> to vector<5x8xf32>
    %23 = arith.truncf %22 : vector<5x8xf32> to vector<5x8xbf16>
    %24 = vector.extract_strided_slice %16 {offsets = [0, 0], sizes = [5, 8], strides = [1, 1]} : vector<5x32xf32> to vector<5x8xf32>
    %25 = arith.truncf %24 : vector<5x8xf32> to vector<5x8xbf16>
    %26 = vector.extract_strided_slice %21 {offsets = [0, 0], sizes = [5, 8], strides = [1, 1]} : vector<5x32xf32> to vector<5x8xf32>
    %27 = arith.truncf %26 : vector<5x8xf32> to vector<5x8xbf16>
    %cst_17 = arith.constant dense<0.000000e+00> : vector<5x5xf32>
    %28 = tpu.matmul %23, %25, %cst_17 {dimension_numbers = #tpu.dot_dimension_numbers<[1], [1], [0], [0], [0, 0, 1, 0], [], []>} : vector<5x8xbf16>, vector<5x8xbf16>, vector<5x5xf32> -> vector<5x5xf32>
    %cst_18 = arith.constant dense<0xFF800000> : vector<5xf32>
    %29 = vector.multi_reduction <maximumf>, %28, %cst_18 [1] : vector<5x5xf32> to vector<5xf32>
    %30 = vector.shape_cast %29 : vector<5xf32> to vector<5x1xf32>
    %31 = vector.broadcast %30 : vector<5x1xf32> to vector<5x5xf32>
    %32 = arith.subf %28, %31 : vector<5x5xf32>
    %33 = math.exp %32 : vector<5x5xf32>
    %cst_19 = arith.constant dense<0.000000e+00> : vector<5xf32>
    %34 = vector.multi_reduction <add>, %33, %cst_19 [1] : vector<5x5xf32> to vector<5xf32>
    %35 = vector.shape_cast %34 : vector<5xf32> to vector<5x1xf32>
    %36 = tpu.reciprocal %35 {approx = true} : vector<5x1xf32> -> vector<5x1xf32>
    %37 = vector.broadcast %36 : vector<5x1xf32> to vector<5x5xf32>
    %38 = arith.mulf %33, %37 : vector<5x5xf32>
    %39 = arith.truncf %38 : vector<5x5xf32> to vector<5x5xbf16>
    %cst_20 = arith.constant dense<0.000000e+00> : vector<5x8xf32>
    %40 = tpu.matmul %39, %27, %cst_20 {dimension_numbers = #tpu.dot_dimension_numbers<[1], [0], [0], [1], [0, 0, 1, 1], [], []>} : vector<5x5xbf16>, vector<5x8xbf16>, vector<5x8xf32> -> vector<5x8xf32>
    %41 = vector.extract_strided_slice %11 {offsets = [0, 8], sizes = [5, 8], strides = [1, 1]} : vector<5x32xf32> to vector<5x8xf32>
    %42 = arith.truncf %41 : vector<5x8xf32> to vector<5x8xbf16>
    %43 = vector.extract_strided_slice %16 {offsets = [0, 8], sizes = [5, 8], strides = [1, 1]} : vector<5x32xf32> to vector<5x8xf32>
    %44 = arith.truncf %43 : vector<5x8xf32> to vector<5x8xbf16>
    %45 = vector.extract_strided_slice %21 {offsets = [0, 8], sizes = [5, 8], strides = [1, 1]} : vector<5x32xf32> to vector<5x8xf32>
    %46 = arith.truncf %45 : vector<5x8xf32> to vector<5x8xbf16>
    %cst_21 = arith.constant dense<0.000000e+00> : vector<5x5xf32>
    %47 = tpu.matmul %42, %44, %cst_21 {dimension_numbers = #tpu.dot_dimension_numbers<[1], [1], [0], [0], [0, 0, 1, 0], [], []>} : vector<5x8xbf16>, vector<5x8xbf16>, vector<5x5xf32> -> vector<5x5xf32>
    %cst_22 = arith.constant dense<0xFF800000> : vector<5xf32>
    %48 = vector.multi_reduction <maximumf>, %47, %cst_22 [1] : vector<5x5xf32> to vector<5xf32>
    %49 = vector.shape_cast %48 : vector<5xf32> to vector<5x1xf32>
    %50 = vector.broadcast %49 : vector<5x1xf32> to vector<5x5xf32>
    %51 = arith.subf %47, %50 : vector<5x5xf32>
    %52 = math.exp %51 : vector<5x5xf32>
    %cst_23 = arith.constant dense<0.000000e+00> : vector<5xf32>
    %53 = vector.multi_reduction <add>, %52, %cst_23 [1] : vector<5x5xf32> to vector<5xf32>
    %54 = vector.shape_cast %53 : vector<5xf32> to vector<5x1xf32>
    %55 = tpu.reciprocal %54 {approx = true} : vector<5x1xf32> -> vector<5x1xf32>
    %56 = vector.broadcast %55 : vector<5x1xf32> to vector<5x5xf32>
    %57 = arith.mulf %52, %56 : vector<5x5xf32>
    %58 = arith.truncf %57 : vector<5x5xf32> to vector<5x5xbf16>
    %cst_24 = arith.constant dense<0.000000e+00> : vector<5x8xf32>
    %59 = tpu.matmul %58, %46, %cst_24 {dimension_numbers = #tpu.dot_dimension_numbers<[1], [0], [0], [1], [0, 0, 1, 1], [], []>} : vector<5x5xbf16>, vector<5x8xbf16>, vector<5x8xf32> -> vector<5x8xf32>
    %60 = vector.extract_strided_slice %11 {offsets = [0, 16], sizes = [5, 8], strides = [1, 1]} : vector<5x32xf32> to vector<5x8xf32>
    %61 = arith.truncf %60 : vector<5x8xf32> to vector<5x8xbf16>
    %62 = vector.extract_strided_slice %16 {offsets = [0, 16], sizes = [5, 8], strides = [1, 1]} : vector<5x32xf32> to vector<5x8xf32>
    %63 = arith.truncf %62 : vector<5x8xf32> to vector<5x8xbf16>
    %64 = vector.extract_strided_slice %21 {offsets = [0, 16], sizes = [5, 8], strides = [1, 1]} : vector<5x32xf32> to vector<5x8xf32>
    %65 = arith.truncf %64 : vector<5x8xf32> to vector<5x8xbf16>
    %cst_25 = arith.constant dense<0.000000e+00> : vector<5x5xf32>
    %66 = tpu.matmul %61, %63, %cst_25 {dimension_numbers = #tpu.dot_dimension_numbers<[1], [1], [0], [0], [0, 0, 1, 0], [], []>} : vector<5x8xbf16>, vector<5x8xbf16>, vector<5x5xf32> -> vector<5x5xf32>
    %cst_26 = arith.constant dense<0xFF800000> : vector<5xf32>
    %67 = vector.multi_reduction <maximumf>, %66, %cst_26 [1] : vector<5x5xf32> to vector<5xf32>
    %68 = vector.shape_cast %67 : vector<5xf32> to vector<5x1xf32>
    %69 = vector.broadcast %68 : vector<5x1xf32> to vector<5x5xf32>
    %70 = arith.subf %66, %69 : vector<5x5xf32>
    %71 = math.exp %70 : vector<5x5xf32>
    %cst_27 = arith.constant dense<0.000000e+00> : vector<5xf32>
    %72 = vector.multi_reduction <add>, %71, %cst_27 [1] : vector<5x5xf32> to vector<5xf32>
    %73 = vector.shape_cast %72 : vector<5xf32> to vector<5x1xf32>
    %74 = tpu.reciprocal %73 {approx = true} : vector<5x1xf32> -> vector<5x1xf32>
    %75 = vector.broadcast %74 : vector<5x1xf32> to vector<5x5xf32>
    %76 = arith.mulf %71, %75 : vector<5x5xf32>
    %77 = arith.truncf %76 : vector<5x5xf32> to vector<5x5xbf16>
    %cst_28 = arith.constant dense<0.000000e+00> : vector<5x8xf32>
    %78 = tpu.matmul %77, %65, %cst_28 {dimension_numbers = #tpu.dot_dimension_numbers<[1], [0], [0], [1], [0, 0, 1, 1], [], []>} : vector<5x5xbf16>, vector<5x8xbf16>, vector<5x8xf32> -> vector<5x8xf32>
    %79 = vector.extract_strided_slice %11 {offsets = [0, 24], sizes = [5, 8], strides = [1, 1]} : vector<5x32xf32> to vector<5x8xf32>
    %80 = arith.truncf %79 : vector<5x8xf32> to vector<5x8xbf16>
    %81 = vector.extract_strided_slice %16 {offsets = [0, 24], sizes = [5, 8], strides = [1, 1]} : vector<5x32xf32> to vector<5x8xf32>
    %82 = arith.truncf %81 : vector<5x8xf32> to vector<5x8xbf16>
    %83 = vector.extract_strided_slice %21 {offsets = [0, 24], sizes = [5, 8], strides = [1, 1]} : vector<5x32xf32> to vector<5x8xf32>
    %84 = arith.truncf %83 : vector<5x8xf32> to vector<5x8xbf16>
    %cst_29 = arith.constant dense<0.000000e+00> : vector<5x5xf32>
    %85 = tpu.matmul %80, %82, %cst_29 {dimension_numbers = #tpu.dot_dimension_numbers<[1], [1], [0], [0], [0, 0, 1, 0], [], []>} : vector<5x8xbf16>, vector<5x8xbf16>, vector<5x5xf32> -> vector<5x5xf32>
    %cst_30 = arith.constant dense<0xFF800000> : vector<5xf32>
    %86 = vector.multi_reduction <maximumf>, %85, %cst_30 [1] : vector<5x5xf32> to vector<5xf32>
    %87 = vector.shape_cast %86 : vector<5xf32> to vector<5x1xf32>
    %88 = vector.broadcast %87 : vector<5x1xf32> to vector<5x5xf32>
    %89 = arith.subf %85, %88 : vector<5x5xf32>
    %90 = math.exp %89 : vector<5x5xf32>
    %cst_31 = arith.constant dense<0.000000e+00> : vector<5xf32>
    %91 = vector.multi_reduction <add>, %90, %cst_31 [1] : vector<5x5xf32> to vector<5xf32>
    %92 = vector.shape_cast %91 : vector<5xf32> to vector<5x1xf32>
    %93 = tpu.reciprocal %92 {approx = true} : vector<5x1xf32> -> vector<5x1xf32>
    %94 = vector.broadcast %93 : vector<5x1xf32> to vector<5x5xf32>
    %95 = arith.mulf %90, %94 : vector<5x5xf32>
    %96 = arith.truncf %95 : vector<5x5xf32> to vector<5x5xbf16>
    %cst_32 = arith.constant dense<0.000000e+00> : vector<5x8xf32>
    %97 = tpu.matmul %96, %84, %cst_32 {dimension_numbers = #tpu.dot_dimension_numbers<[1], [0], [0], [1], [0, 0, 1, 1], [], []>} : vector<5x5xbf16>, vector<5x8xbf16>, vector<5x8xf32> -> vector<5x8xf32>
    %98 = tpu.concatenate %40, %59, %78, %97 in 1 : vector<5x8xf32>, vector<5x8xf32>, vector<5x8xf32>, vector<5x8xf32> -> vector<5x32xf32>
    %c0_33 = arith.constant 0 : index
    %c0_34 = arith.constant 0 : index
    %99 = vector.load %arg15[%c0_33, %c0_34] : memref<5x32xf32, #tpu.memory_space<vmem>>, vector<5x32xf32>
    %100 = arith.truncf %98 : vector<5x32xf32> to vector<5x32xbf16>
    %c0_35 = arith.constant 0 : index
    %c0_36 = arith.constant 0 : index
    %101 = vector.load %arg11[%c0_35, %c0_36] : memref<32x32xbf16, #tpu.memory_space<vmem>>, vector<32x32xbf16>
    %cst_37 = arith.constant dense<0.000000e+00> : vector<5x32xf32>
    %102 = tpu.matmul %100, %101, %cst_37 {dimension_numbers = #tpu.dot_dimension_numbers<[1], [0], [0], [1], [0, 0, 1, 1], [], []>} : vector<5x32xbf16>, vector<32x32xbf16>, vector<5x32xf32> -> vector<5x32xf32>
    %103 = arith.addf %99, %102 : vector<5x32xf32>
    %c0_38 = arith.constant 0 : index
    %c0_39 = arith.constant 0 : index
    %104 = vector.load %arg15[%c0_38, %c0_39] : memref<5x32xf32, #tpu.memory_space<vmem>>, vector<5x32xf32>
    tpu.vector_store %arg15[%c0_38, %c0_39], %103 {strides = array<i32>} : memref<5x32xf32, #tpu.memory_space<vmem>>, vector<5x32xf32>,
    %c0_i32_40 = arith.constant 0 : i32
    %105 = arith.cmpi eq, %arg1, %c0_i32_40 : i32
    %106 = arith.extui %105 : i1 to i32
    %c0_i32_41 = arith.constant 0 : i32
    %107 = arith.cmpi ne, %106, %c0_i32_41 : i32
    scf.if %107 {
      %c0_42 = arith.constant 0 : index
      %c0_43 = arith.constant 0 : index
      %108 = vector.load %arg15[%c0_42, %c0_43] : memref<5x32xf32, #tpu.memory_space<vmem>>, vector<5x32xf32>
      %c0_44 = arith.constant 0 : index
      %c0_45 = arith.constant 0 : index
      %c0_46 = arith.constant 0 : index
      %109 = vector.load %arg13[%c0_44, %c0_45, %c0_46] : memref<1x5x32xf32, #tpu.memory_space<vmem>>, vector<1x5x32xf32>
      %110 = vector.shape_cast %109 : vector<1x5x32xf32> to vector<5x32xf32>
      %111 = vector.shape_cast %108 : vector<5x32xf32> to vector<1x5x32xf32>
      tpu.vector_store %arg13[%c0_44, %c0_45, %c0_46], %111 {strides = array<i32>} : memref<1x5x32xf32, #tpu.memory_space<vmem>>, vector<1x5x32xf32>,
    } else {
    }
    return
  }
  func.func @transform_0(%arg0: i32, %arg1: i32) -> (i32, i32, i32) {
    %c0_i32 = arith.constant 0 : i32
    %c0_i32_0 = arith.constant 0 : i32
    %c0_i32_1 = arith.constant 0 : i32
    return %arg0, %c0_i32, %c0_i32_0 : i32, i32, i32
  }
  func.func @transform_1(%arg0: i32, %arg1: i32) -> (i32, i32) {
    %c0_i32 = arith.constant 0 : i32
    %c0_i32_0 = arith.constant 0 : i32
    %c0_i32_1 = arith.constant 0 : i32
    return %c0_i32, %c0_i32_0 : i32, i32
  }
  func.func @transform_2(%arg0: i32, %arg1: i32) -> (i32, i32) {
    %c0_i32 = arith.constant 0 : i32
    %c0_i32_0 = arith.constant 0 : i32
    %c0_i32_1 = arith.constant 0 : i32
    return %c0_i32, %c0_i32_0 : i32, i32
  }
  func.func @transform_3(%arg0: i32, %arg1: i32) -> (i32, i32) {
    %c0_i32 = arith.constant 0 : i32
    %c0_i32_0 = arith.constant 0 : i32
    return %c0_i32, %arg1 : i32, i32
  }
  func.func @transform_4(%arg0: i32, %arg1: i32) -> (i32, i32) {
    %c0_i32 = arith.constant 0 : i32
    %c0_i32_0 = arith.constant 0 : i32
    return %c0_i32, %arg1 : i32, i32
  }
  func.func @transform_5(%arg0: i32, %arg1: i32) -> (i32, i32) {
    %c0_i32 = arith.constant 0 : i32
    %c0_i32_0 = arith.constant 0 : i32
    return %c0_i32, %arg1 : i32, i32
  }
  func.func @transform_6(%arg0: i32, %arg1: i32) -> (i32, i32) {
    %c0_i32 = arith.constant 0 : i32
    %c0_i32_0 = arith.constant 0 : i32
    return %c0_i32, %arg1 : i32, i32
  }
  func.func @transform_7(%arg0: i32, %arg1: i32) -> (i32, i32) {
    %c0_i32 = arith.constant 0 : i32
    %c0_i32_0 = arith.constant 0 : i32
    return %c0_i32, %arg1 : i32, i32
  }
  func.func @transform_8(%arg0: i32, %arg1: i32) -> (i32, i32) {
    %c0_i32 = arith.constant 0 : i32
    %c0_i32_0 = arith.constant 0 : i32
    return %c0_i32, %arg1 : i32, i32
  }
  func.func @transform_9(%arg0: i32, %arg1: i32) -> (i32, i32) {
    %c0_i32 = arith.constant 0 : i32
    %c0_i32_0 = arith.constant 0 : i32
    return %arg1, %c0_i32 : i32, i32
  }
  func.func @transform_10(%arg0: i32, %arg1: i32) -> (i32, i32) {
    %c0_i32 = arith.constant 0 : i32
    %c0_i32_0 = arith.constant 0 : i32
    %c0_i32_1 = arith.constant 0 : i32
    return %c0_i32, %c0_i32_0 : i32, i32
  }
  func.func @transform_11(%arg0: i32, %arg1: i32) -> (i32, i32, i32) {
    %c0_i32 = arith.constant 0 : i32
    %c0_i32_0 = arith.constant 0 : i32
    %c0_i32_1 = arith.constant 0 : i32
    return %arg0, %c0_i32, %c0_i32_0 : i32, i32, i32
  }
}

module attributes {stable_mosaic.version = 11 : i64} {
  func.func @_ln_mlp_kernel(%arg0: i32, %arg1: i32, %arg2: memref<1x5x32xf32, #tpu.memory_space<vmem>>, %arg3: memref<1x32xf32, #tpu.memory_space<vmem>>, %arg4: memref<1x32xf32, #tpu.memory_space<vmem>>, %arg5: memref<32x64xbf16, #tpu.memory_space<vmem>>, %arg6: memref<1x64xf32, #tpu.memory_space<vmem>>, %arg7: memref<64x32xbf16, #tpu.memory_space<vmem>>, %arg8: memref<1x32xf32, #tpu.memory_space<vmem>>, %arg9: memref<1x5x32xf32, #tpu.memory_space<vmem>>, %arg10: memref<5x32xf32, #tpu.memory_space<vmem>>, %arg11: memref<5x32xf32, #tpu.memory_space<vmem>>) attributes {dimension_semantics = [#tpu.dimension_semantics<parallel>, #tpu.dimension_semantics<arbitrary>], iteration_bounds = array<i64: 2, 1>, scalar_prefetch = 0 : i64, scratch_operands = 2 : i64, tpu.core_type = #tpu.core_type<tc>, window_params = [{transform_indices = @transform_0, window_bounds = array<i64: 1, 5, 32>}, {pipeline_mode = #tpu.pipeline_mode<synchronous>, transform_indices = @transform_1, window_bounds = array<i64: 1, 32>}, {pipeline_mode = #tpu.pipeline_mode<synchronous>, transform_indices = @transform_2, window_bounds = array<i64: 1, 32>}, {transform_indices = @transform_3, window_bounds = array<i64: 32, 64>}, {transform_indices = @transform_4, window_bounds = array<i64: 1, 64>}, {transform_indices = @transform_5, window_bounds = array<i64: 64, 32>}, {pipeline_mode = #tpu.pipeline_mode<synchronous>, transform_indices = @transform_6, window_bounds = array<i64: 1, 32>}, {transform_indices = @transform_7, window_bounds = array<i64: 1, 5, 32>}]} {
    %c0_i32 = arith.constant 0 : i32
    %0 = arith.cmpi eq, %arg1, %c0_i32 : i32
    %1 = arith.extui %0 : i1 to i32
    %c0_i32_0 = arith.constant 0 : i32
    %2 = arith.cmpi ne, %1, %c0_i32_0 : i32
    scf.if %2 {
      %c0_17 = arith.constant 0 : index
      %c0_18 = arith.constant 0 : index
      %c0_19 = arith.constant 0 : index
      %27 = vector.load %arg2[%c0_17, %c0_18, %c0_19] : memref<1x5x32xf32, #tpu.memory_space<vmem>>, vector<1x5x32xf32>
      %28 = vector.shape_cast %27 : vector<1x5x32xf32> to vector<5x32xf32>
      %c0_20 = arith.constant 0 : index
      %c0_21 = arith.constant 0 : index
      %29 = vector.load %arg3[%c0_20, %c0_21] : memref<1x32xf32, #tpu.memory_space<vmem>>, vector<1x32xf32>
      %c0_22 = arith.constant 0 : index
      %c0_23 = arith.constant 0 : index
      %30 = vector.load %arg4[%c0_22, %c0_23] : memref<1x32xf32, #tpu.memory_space<vmem>>, vector<1x32xf32>
      %cst_24 = arith.constant dense<0.000000e+00> : vector<5xf32>
      %31 = vector.multi_reduction <add>, %28, %cst_24 [1] : vector<5x32xf32> to vector<5xf32>
      %32 = vector.shape_cast %31 : vector<5xf32> to vector<5x1xf32>
      %cst_25 = arith.constant 3.200000e+01 : f32
      %33 = vector.broadcast %cst_25 : f32 to vector<5x1xf32>
      %34 = arith.divf %32, %33 : vector<5x1xf32>
      %35 = vector.broadcast %34 : vector<5x1xf32> to vector<5x32xf32>
      %36 = arith.subf %28, %35 : vector<5x32xf32>
      %37 = arith.mulf %36, %36 : vector<5x32xf32>
      %cst_26 = arith.constant dense<0.000000e+00> : vector<5xf32>
      %38 = vector.multi_reduction <add>, %37, %cst_26 [1] : vector<5x32xf32> to vector<5xf32>
      %39 = vector.shape_cast %38 : vector<5xf32> to vector<5x1xf32>
      %cst_27 = arith.constant 3.200000e+01 : f32
      %40 = vector.broadcast %cst_27 : f32 to vector<5x1xf32>
      %41 = arith.divf %39, %40 : vector<5x1xf32>
      %42 = vector.broadcast %34 : vector<5x1xf32> to vector<5x32xf32>
      %43 = arith.subf %28, %42 : vector<5x32xf32>
      %cst_28 = arith.constant 9.99999974E-6 : f32
      %44 = vector.broadcast %cst_28 : f32 to vector<5x1xf32>
      %45 = arith.addf %41, %44 : vector<5x1xf32>
      %46 = math.rsqrt %45 : vector<5x1xf32>
      %47 = vector.broadcast %46 : vector<5x1xf32> to vector<5x32xf32>
      %48 = arith.mulf %43, %47 : vector<5x32xf32>
      %49 = vector.broadcast %29 : vector<1x32xf32> to vector<5x32xf32>
      %50 = arith.mulf %48, %49 : vector<5x32xf32>
      %51 = vector.broadcast %30 : vector<1x32xf32> to vector<5x32xf32>
      %52 = arith.addf %50, %51 : vector<5x32xf32>
      %c0_29 = arith.constant 0 : index
      %c0_30 = arith.constant 0 : index
      %53 = vector.load %arg10[%c0_29, %c0_30] : memref<5x32xf32, #tpu.memory_space<vmem>>, vector<5x32xf32>
      tpu.vector_store %arg10[%c0_29, %c0_30], %52 {strides = array<i32>} : memref<5x32xf32, #tpu.memory_space<vmem>>, vector<5x32xf32>,
      %c0_31 = arith.constant 0 : index
      %c0_32 = arith.constant 0 : index
      %54 = vector.load %arg8[%c0_31, %c0_32] : memref<1x32xf32, #tpu.memory_space<vmem>>, vector<1x32xf32>
      %55 = vector.broadcast %54 : vector<1x32xf32> to vector<5x32xf32>
      %56 = arith.addf %28, %55 : vector<5x32xf32>
      %c0_33 = arith.constant 0 : index
      %c0_34 = arith.constant 0 : index
      %57 = vector.load %arg11[%c0_33, %c0_34] : memref<5x32xf32, #tpu.memory_space<vmem>>, vector<5x32xf32>
      tpu.vector_store %arg11[%c0_33, %c0_34], %56 {strides = array<i32>} : memref<5x32xf32, #tpu.memory_space<vmem>>, vector<5x32xf32>,
    } else {
    }
    %c0 = arith.constant 0 : index
    %c0_1 = arith.constant 0 : index
    %3 = vector.load %arg10[%c0, %c0_1] : memref<5x32xf32, #tpu.memory_space<vmem>>, vector<5x32xf32>
    %4 = arith.truncf %3 : vector<5x32xf32> to vector<5x32xbf16>
    %c0_2 = arith.constant 0 : index
    %c0_3 = arith.constant 0 : index
    %5 = vector.load %arg5[%c0_2, %c0_3] : memref<32x64xbf16, #tpu.memory_space<vmem>>, vector<32x64xbf16>
    %cst = arith.constant dense<0.000000e+00> : vector<5x64xf32>
    %6 = tpu.matmul %4, %5, %cst {dimension_numbers = #tpu.dot_dimension_numbers<[1], [0], [0], [1], [0, 0, 1, 1], [], []>} : vector<5x32xbf16>, vector<32x64xbf16>, vector<5x64xf32> -> vector<5x64xf32>
    %c0_4 = arith.constant 0 : index
    %c0_5 = arith.constant 0 : index
    %7 = vector.load %arg6[%c0_4, %c0_5] : memref<1x64xf32, #tpu.memory_space<vmem>>, vector<1x64xf32>
    %8 = vector.broadcast %7 : vector<1x64xf32> to vector<5x64xf32>
    %9 = arith.addf %6, %8 : vector<5x64xf32>
    %cst_6 = arith.constant 1.702000e+00 : f32
    %10 = vector.broadcast %cst_6 : f32 to vector<5x64xf32>
    %11 = arith.mulf %10, %9 : vector<5x64xf32>
    %12 = arith.negf %11 : vector<5x64xf32>
    %13 = math.exp %12 : vector<5x64xf32>
    %cst_7 = arith.constant 1.000000e+00 : f32
    %14 = vector.broadcast %cst_7 : f32 to vector<5x64xf32>
    %15 = arith.addf %14, %13 : vector<5x64xf32>
    %16 = arith.divf %14, %15 : vector<5x64xf32>
    %17 = arith.mulf %9, %16 : vector<5x64xf32>
    %c0_8 = arith.constant 0 : index
    %c0_9 = arith.constant 0 : index
    %18 = vector.load %arg11[%c0_8, %c0_9] : memref<5x32xf32, #tpu.memory_space<vmem>>, vector<5x32xf32>
    %19 = arith.truncf %17 : vector<5x64xf32> to vector<5x64xbf16>
    %c0_10 = arith.constant 0 : index
    %c0_11 = arith.constant 0 : index
    %20 = vector.load %arg7[%c0_10, %c0_11] : memref<64x32xbf16, #tpu.memory_space<vmem>>, vector<64x32xbf16>
    %cst_12 = arith.constant dense<0.000000e+00> : vector<5x32xf32>
    %21 = tpu.matmul %19, %20, %cst_12 {dimension_numbers = #tpu.dot_dimension_numbers<[1], [0], [0], [1], [0, 0, 1, 1], [], []>} : vector<5x64xbf16>, vector<64x32xbf16>, vector<5x32xf32> -> vector<5x32xf32>
    %22 = arith.addf %18, %21 : vector<5x32xf32>
    %c0_13 = arith.constant 0 : index
    %c0_14 = arith.constant 0 : index
    %23 = vector.load %arg11[%c0_13, %c0_14] : memref<5x32xf32, #tpu.memory_space<vmem>>, vector<5x32xf32>
    tpu.vector_store %arg11[%c0_13, %c0_14], %22 {strides = array<i32>} : memref<5x32xf32, #tpu.memory_space<vmem>>, vector<5x32xf32>,
    %c0_i32_15 = arith.constant 0 : i32
    %24 = arith.cmpi eq, %arg1, %c0_i32_15 : i32
    %25 = arith.extui %24 : i1 to i32
    %c0_i32_16 = arith.constant 0 : i32
    %26 = arith.cmpi ne, %25, %c0_i32_16 : i32
    scf.if %26 {
      %c0_17 = arith.constant 0 : index
      %c0_18 = arith.constant 0 : index
      %27 = vector.load %arg11[%c0_17, %c0_18] : memref<5x32xf32, #tpu.memory_space<vmem>>, vector<5x32xf32>
      %c0_19 = arith.constant 0 : index
      %c0_20 = arith.constant 0 : index
      %c0_21 = arith.constant 0 : index
      %28 = vector.load %arg9[%c0_19, %c0_20, %c0_21] : memref<1x5x32xf32, #tpu.memory_space<vmem>>, vector<1x5x32xf32>
      %29 = vector.shape_cast %28 : vector<1x5x32xf32> to vector<5x32xf32>
      %30 = vector.shape_cast %27 : vector<5x32xf32> to vector<1x5x32xf32>
      tpu.vector_store %arg9[%c0_19, %c0_20, %c0_21], %30 {strides = array<i32>} : memref<1x5x32xf32, #tpu.memory_space<vmem>>, vector<1x5x32xf32>,
    } else {
    }
    return
  }
  func.func @transform_0(%arg0: i32, %arg1: i32) -> (i32, i32, i32) {
    %c0_i32 = arith.constant 0 : i32
    %c0_i32_0 = arith.constant 0 : i32
    %c0_i32_1 = arith.constant 0 : i32
    return %arg0, %c0_i32, %c0_i32_0 : i32, i32, i32
  }
  func.func @transform_1(%arg0: i32, %arg1: i32) -> (i32, i32) {
    %c0_i32 = arith.constant 0 : i32
    %c0_i32_0 = arith.constant 0 : i32
    %c0_i32_1 = arith.constant 0 : i32
    return %c0_i32, %c0_i32_0 : i32, i32
  }
  func.func @transform_2(%arg0: i32, %arg1: i32) -> (i32, i32) {
    %c0_i32 = arith.constant 0 : i32
    %c0_i32_0 = arith.constant 0 : i32
    %c0_i32_1 = arith.constant 0 : i32
    return %c0_i32, %c0_i32_0 : i32, i32
  }
  func.func @transform_3(%arg0: i32, %arg1: i32) -> (i32, i32) {
    %c0_i32 = arith.constant 0 : i32
    %c0_i32_0 = arith.constant 0 : i32
    return %c0_i32, %arg1 : i32, i32
  }
  func.func @transform_4(%arg0: i32, %arg1: i32) -> (i32, i32) {
    %c0_i32 = arith.constant 0 : i32
    %c0_i32_0 = arith.constant 0 : i32
    return %c0_i32, %arg1 : i32, i32
  }
  func.func @transform_5(%arg0: i32, %arg1: i32) -> (i32, i32) {
    %c0_i32 = arith.constant 0 : i32
    %c0_i32_0 = arith.constant 0 : i32
    return %arg1, %c0_i32 : i32, i32
  }
  func.func @transform_6(%arg0: i32, %arg1: i32) -> (i32, i32) {
    %c0_i32 = arith.constant 0 : i32
    %c0_i32_0 = arith.constant 0 : i32
    %c0_i32_1 = arith.constant 0 : i32
    return %c0_i32, %c0_i32_0 : i32, i32
  }
  func.func @transform_7(%arg0: i32, %arg1: i32) -> (i32, i32, i32) {
    %c0_i32 = arith.constant 0 : i32
    %c0_i32_0 = arith.constant 0 : i32
    %c0_i32_1 = arith.constant 0 : i32
    return %arg0, %c0_i32, %c0_i32_0 : i32, i32, i32
  }
}

</mosaic_0001>

<llo_original>
// kernel: _lambda_.5
$region0: #{_lambda_.5}
  #allocation0 [shape = 'u32[]', space=smem, size = 0x4, offset = 0x4, fixed_abs, tag = 'smem constant byte address 0x4 - core index']
  #allocation1 [shape = 'u32[144,128]{1,0:T(1,128)}', space=vmem, size = 0x12000, scoped, tag = 'internal scratch']
  %s0 = inlined_call_operand.vmem [shape: f32[2,5,192], index: 0, kind: input, shape index: {}]
  %s1 = inlined_call_operand.vmem [shape: bf16[192,32], index: 1, kind: input, shape index: {}]
  %s2 = inlined_call_operand.vmem [shape: f32[5,32], index: 2, kind: input, shape index: {}]
  %s3 = inlined_call_operand.vmem [shape: f32[1,32], index: 3, kind: input, shape index: {}]
  %s4 = inlined_call_operand.vmem [shape: f32[1,32], index: 4, kind: input, shape index: {}]
  %s5 = inlined_call_operand.vmem [shape: f32[2,5,32], index: 5, kind: output, shape index: {}]
  %s6 = sld [smem:[#allocation0]]
  $region53: #{_lambda_.5} parent=0
    _
  %s8 = ssub.s32 1, %s6
  %s9 = scalar_select 0, %s8, %s6
  loop: start=0, step=1, limit=4
  $region2: #{_lambda_.5} parent=0 // loop_pre_header
    _
  $region3: #{_lambda_.5} parent=0 // loop_header
    %s11 = sphi 0, %s15
    %p12 = scmp.ge.s32.totalorder %s11, 4
    %s21 = sphi 0, %s23
    %s24 = sphi 0, %s21
    %s25 = sphi 0, %s24
    %s41 = sphi 0, %s25
    %s45 = sphi 0, %s45
    %s47 = sphi 0, %s45
    %s48 = sphi 0, %s47
    %s62 = sphi 0, %s48
    %s66 = sphi 0, %s66
    %s68 = sphi 0, %s66
    %s69 = sphi 0, %s68
    %s83 = sphi 0, %s69
    %s87 = sphi 0, %s87
    %s89 = sphi 0, %s87
    %s90 = sphi 0, %s89
    %s104 = sphi 0, %s90
    %s108 = sphi 0, %s108
    %s110 = sphi 0, %s108
    %s111 = sphi 0, %s110
    %s125 = sphi 0, %s111
    %s131 = sphi 0, %s133
    %s134 = sphi 0, %s131
    %s135 = sphi 0, %s134
    %s151 = sphi 0, %s135
  $region4: #{_lambda_.5} parent=0 // loop_header_branch
    %14 = sbr.rel (%p12) target = $region8
  $region5: #{_lambda_.5} parent=0 // loop_body
    %s16 = ssub.s32 %s11, 1
    %s17 = ssub.s32 %s11, 2
    %s18 = sadd.s32 %s11, 1
    %s19 = ssub.s32 %s11, %s18
    %p20 = scmp.eq.s32.totalorder %s19, 0
    %s22 = sadd.s32 %s21, 1
    %s23 = scalar_select %p20, %s21, %s22
    %p26 = pneg %p20
    %p27 = scmp.eq.s32.totalorder %s11, 1
    %p28 = por %p26, %p27
    %p29 = scmp.ne.s32.totalorder %s21, %s24
    %p30 = scmp.eq.s32.totalorder %s11, 0
    %p31 = por %p29, %p30
    %p32 = scmp.ne.s32.totalorder %s21, %s24
    %p33 = scmp.eq.s32.totalorder %s16, 1
    %p34 = por %p32, %p33
    %p35 = scmp.ne.s32.totalorder %s24, %s25
    %p36 = scmp.eq.s32.totalorder %s16, 0
    %p37 = por %p35, %p36
    %p38 = scmp.ne.s32.totalorder %s24, %s25
    %p39 = scmp.eq.s32.totalorder %s17, 1
    %p40 = por %p38, %p39
    %p42 = scmp.ne.s32.totalorder %s25, %s41
    %p43 = scmp.eq.s32.totalorder %s17, 0
    %p44 = por %p42, %p43
    %s46 = sadd.s32 %s45, 1
    %p49 = scmp.eq.s32.totalorder %s11, 1
    %p50 = scmp.ne.s32.totalorder %s45, %s47
    %p51 = scmp.eq.s32.totalorder %s11, 0
    %p52 = por %p50, %p51
    %p53 = scmp.ne.s32.totalorder %s45, %s47
    %p54 = scmp.eq.s32.totalorder %s16, 1
    %p55 = por %p53, %p54
    %p56 = scmp.ne.s32.totalorder %s47, %s48
    %p57 = scmp.eq.s32.totalorder %s16, 0
    %p58 = por %p56, %p57
    %p59 = scmp.ne.s32.totalorder %s47, %s48
    %p60 = scmp.eq.s32.totalorder %s17, 1
    %p61 = por %p59, %p60
    %p63 = scmp.ne.s32.totalorder %s48, %s62
    %p64 = scmp.eq.s32.totalorder %s17, 0
    %p65 = por %p63, %p64
    %s67 = sadd.s32 %s66, 1
    %p70 = scmp.eq.s32.totalorder %s11, 1
    %p71 = scmp.ne.s32.totalorder %s66, %s68
    %p72 = scmp.eq.s32.totalorder %s11, 0
    %p73 = por %p71, %p72
    %p74 = scmp.ne.s32.totalorder %s66, %s68
    %p75 = scmp.eq.s32.totalorder %s16, 1
    %p76 = por %p74, %p75
    %p77 = scmp.ne.s32.totalorder %s68, %s69
    %p78 = scmp.eq.s32.totalorder %s16, 0
    %p79 = por %p77, %p78
    %p80 = scmp.ne.s32.totalorder %s68, %s69
    %p81 = scmp.eq.s32.totalorder %s17, 1
    %p82 = por %p80, %p81
    %p84 = scmp.ne.s32.totalorder %s69, %s83
    %p85 = scmp.eq.s32.totalorder %s17, 0
    %p86 = por %p84, %p85
    %s88 = sadd.s32 %s87, 1
    %p91 = scmp.eq.s32.totalorder %s11, 1
    %p92 = scmp.ne.s32.totalorder %s87, %s89
    %p93 = scmp.eq.s32.totalorder %s11, 0
    %p94 = por %p92, %p93
    %p95 = scmp.ne.s32.totalorder %s87, %s89
    %p96 = scmp.eq.s32.totalorder %s16, 1
    %p97 = por %p95, %p96
    %p98 = scmp.ne.s32.totalorder %s89, %s90
    %p99 = scmp.eq.s32.totalorder %s16, 0
    %p100 = por %p98, %p99
    %p101 = scmp.ne.s32.totalorder %s89, %s90
    %p102 = scmp.eq.s32.totalorder %s17, 1
    %p103 = por %p101, %p102
    %p105 = scmp.ne.s32.totalorder %s90, %s104
    %p106 = scmp.eq.s32.totalorder %s17, 0
    %p107 = por %p105, %p106
    %s109 = sadd.s32 %s108, 1
    %p112 = scmp.eq.s32.totalorder %s11, 1
    %p113 = scmp.ne.s32.totalorder %s108, %s110
    %p114 = scmp.eq.s32.totalorder %s11, 0
    %p115 = por %p113, %p114
    %p116 = scmp.ne.s32.totalorder %s108, %s110
    %p117 = scmp.eq.s32.totalorder %s16, 1
    %p118 = por %p116, %p117
    %p119 = scmp.ne.s32.totalorder %s110, %s111
    %p120 = scmp.eq.s32.totalorder %s16, 0
    %p121 = por %p119, %p120
    %p122 = scmp.ne.s32.totalorder %s110, %s111
    %p123 = scmp.eq.s32.totalorder %s17, 1
    %p124 = por %p122, %p123
    %p126 = scmp.ne.s32.totalorder %s111, %s125
    %p127 = scmp.eq.s32.totalorder %s17, 0
    %p128 = por %p126, %p127
    %s129 = ssub.s32 %s11, %s18
    %p130 = scmp.eq.s32.totalorder %s129, 0
    %s132 = sadd.s32 %s131, 1
    %s133 = scalar_select %p130, %s131, %s132
    %p136 = pneg %p130
    %p137 = scmp.eq.s32.totalorder %s11, 1
    %p138 = por %p136, %p137
    %p139 = scmp.ne.s32.totalorder %s131, %s134
    %p140 = scmp.eq.s32.totalorder %s11, 0
    %p141 = por %p139, %p140
    %p142 = scmp.ne.s32.totalorder %s131, %s134
    %p143 = scmp.eq.s32.totalorder %s16, 1
    %p144 = por %p142, %p143
    %p145 = scmp.ne.s32.totalorder %s134, %s135
    %p146 = scmp.eq.s32.totalorder %s16, 0
    %p147 = por %p145, %p146
    %p148 = scmp.ne.s32.totalorder %s134, %s135
    %p149 = scmp.eq.s32.totalorder %s17, 1
    %p150 = por %p148, %p149
    %p152 = scmp.ne.s32.totalorder %s135, %s151
    %p153 = scmp.eq.s32.totalorder %s17, 0
    %p154 = por %p152, %p153
    %p155 = scmp.le.s32.totalorder 1, %s11
    %p156 = scmp.lt.s32.totalorder %s11, 3
    %p157 = pnand %p155, %p156
    %p158 = pneg %p157
    // Predicated region
    $region9: #{_lambda_.5} parent=5 // pred_check
      _
    $region10: #{_lambda_.5} parent=5 // pred_check_branch
      %160 = sbr.rel (%p157) target = $region12
    $region11: #{_lambda_.5} parent=5 // pred_region
      %s161 = ssub.s32 %s11, 1
      // Predicated region
      $region13: #{_lambda_.5} parent=11 // pred_check
        %p162 = pneg %p58
      $region14: #{_lambda_.5} parent=11 // pred_check_branch
        %164 = sbr.rel (%p162) target = $region16
      $region15: #{_lambda_.5} parent=11 // pred_region
        _
      $region16: #{_lambda_.5} parent=11 // pred_fallthru
        _
      // Predicated region
      $region17: #{_lambda_.5} parent=11 // pred_check
        %p165 = pneg %p79
      $region18: #{_lambda_.5} parent=11 // pred_check_branch
        %167 = sbr.rel (%p165) target = $region20
      $region19: #{_lambda_.5} parent=11 // pred_region
        _
      $region20: #{_lambda_.5} parent=11 // pred_fallthru
        _
      // Predicated region
      $region21: #{_lambda_.5} parent=11 // pred_check
        %p168 = pneg %p100
      $region22: #{_lambda_.5} parent=11 // pred_check_branch
        %170 = sbr.rel (%p168) target = $region24
      $region23: #{_lambda_.5} parent=11 // pred_region
        _
      $region24: #{_lambda_.5} parent=11 // pred_fallthru
        _
      // Predicated region
      $region25: #{_lambda_.5} parent=11 // pred_check
        %p171 = pneg %p121
      $region26: #{_lambda_.5} parent=11 // pred_check_branch
        %173 = sbr.rel (%p171) target = $region28
      $region27: #{_lambda_.5} parent=11 // pred_region
        _
      $region28: #{_lambda_.5} parent=11 // pred_fallthru
        _
    $region12: #{_lambda_.5} parent=5 // pred_fallthru
      _
    %p174 = scmp.lt.s32.totalorder %s11, 2
    // Predicated region
    $region29: #{_lambda_.5} parent=5 // pred_check
      %p175 = pneg %p174
    $region30: #{_lambda_.5} parent=5 // pred_check_branch
      %177 = sbr.rel (%p175) target = $region32
    $region31: #{_lambda_.5} parent=5 // pred_region
      // Predicated region
      $region33: #{_lambda_.5} parent=31 // pred_check
        %p178 = pneg %p31
      $region34: #{_lambda_.5} parent=31 // pred_check_branch
        %180 = sbr.rel (%p178) target = $region36
      $region35: #{_lambda_.5} parent=31 // pred_region
        %p181 = scmp.lt.s32.totalorder %s11, 1
        %s182 = scalar_select %p181, %s11, 1
        %s183 = smul.addr %s182, 2
        %s184 = smul.addr %s183, 8
        %s185 = scalar_lea.vmem %s0, %s184
      $region36: #{_lambda_.5} parent=31 // pred_fallthru
        _
    $region32: #{_lambda_.5} parent=5 // pred_fallthru
      _
    %p186 = scmp.le.s32.totalorder 1, %s11
    %p187 = scmp.lt.s32.totalorder %s11, 3
    %p188 = pnand %p186, %p187
    %p189 = pneg %p188
    // Predicated region
    $region37: #{_lambda_.5} parent=5 // pred_check
      _
    $region38: #{_lambda_.5} parent=5 // pred_check_branch
      %191 = sbr.rel (%p188) target = $region40
    $region39: #{_lambda_.5} parent=5 // pred_region
      %s192 = ssub.s32 %s11, 1
      %p193 = scmp.lt.s32.totalorder %s16, 1
      %s194 = scalar_select %p193, %s16, 1
      %s195 = smul.addr %s194, 2
      %s196 = smul.addr %s195, 8
      %s197 = scalar_lea.vmem %s0, %s196
      %p198 = pneg %p37
      %p199 = pneg %p34
      %p200 = pneg %p58
      %p201 = pneg %p55
      %p202 = pneg %p79
      %p203 = pneg %p76
      %p204 = pneg %p100
      %p205 = pneg %p97
      %p206 = pneg %p121
      %p207 = pneg %p118
      %p208 = pneg %p147
      %p209 = pneg %p144
      %p210 = scmp.lt.s32.totalorder %s16, 1
      %s211 = scalar_select %p210, %s16, 1
      %s212 = smul.addr %s211, 8
      %s213 = scalar_lea.vmem %s5, %s212
      %p214 = scmp.lt.s32.totalorder %s16, 1
      %s215 = scalar_select %p214, %s16, 1
      %s216 = smul.addr %s215, 2
      %s217 = smul.addr %s216, 8
      %s218 = scalar_lea.vmem %s0, %s217
      %p219 = scmp.lt.s32.totalorder %s16, 1
      %s220 = scalar_select %p219, %s16, 1
      %s221 = smul.addr %s220, 8
      %s222 = scalar_lea.vmem %s5, %s221
      %v224 = vld [vmem:[%s218] sm:$0x1f]
      %v225 = vld [vmem:[%s218 + $0x8] sm:$0x1f]
      %v226 = vpack.c.bf16 %v224, %v224
      %v227 = vpack.c.bf16 %v225, %v225
      %v228 = vld [vmem:[%s1] sm:$0xf]
      %v229 = vld [vmem:[%s1 + $0x4] sm:$0xf]
      %v230 = vld [vmem:[%s1 + $0x8] sm:$0xf]
      %v231 = vld [vmem:[%s1 + $0xc] sm:$0xf]
      %v232 = vld [vmem:[%s1 + $0x10] sm:$0xf]
      %v233 = vld [vmem:[%s1 + $0x14] sm:$0xf]
      %v234 = vld [vmem:[%s1 + $0x18] sm:$0xf]
      %v235 = vld [vmem:[%s1 + $0x1c] sm:$0xf]
      %v236 = vld [vmem:[%s1 + $0x20] sm:$0xf]
      %v237 = vld [vmem:[%s1 + $0x24] sm:$0xf]
      %v238 = vld [vmem:[%s1 + $0x28] sm:$0xf]
      %v239 = vld [vmem:[%s1 + $0x2c] sm:$0xf]
      %v240 = vld [vmem:[%s1 + $0x30] sm:$0xf]
      %v241 = vld [vmem:[%s1 + $0x34] sm:$0xf]
      %v242 = vld [vmem:[%s1 + $0x38] sm:$0xf]
      %v243 = vld [vmem:[%s1 + $0x3c] sm:$0xf]
      %v244 = vld [vmem:[%s1 + $0x40] sm:$0xf]
      %v245 = vld [vmem:[%s1 + $0x44] sm:$0xf]
      %v246 = vld [vmem:[%s1 + $0x48] sm:$0xf]
      %v247 = vld [vmem:[%s1 + $0x4c] sm:$0xf]
      %v248 = vld [vmem:[%s1 + $0x50] sm:$0xf]
      %v249 = vld [vmem:[%s1 + $0x54] sm:$0xf]
      %v250 = vld [vmem:[%s1 + $0x58] sm:$0xf]
      %v251 = vld [vmem:[%s1 + $0x5c] sm:$0xf]
      %v252 = vld [vmem:[%s2] sm:$0x1f]
      %v277 = vunpack.c.l.b16 %v228
      %v278 = vunpack.c.l.b16 %v229
      %v279 = vunpack.c.l.b16 %v230
      %v280 = vunpack.c.l.b16 %v231
      %v281 = vunpack.c.l.b16 %v232
      %v282 = vunpack.c.l.b16 %v233
      %v283 = vunpack.c.l.b16 %v234
      %v284 = vunpack.c.l.b16 %v235
      %v285 = vunpack.c.l.b16 %v236
      %v286 = vunpack.c.l.b16 %v237
      %v287 = vunpack.c.l.b16 %v238
      %v288 = vunpack.c.l.b16 %v239
      %v289 = vunpack.c.l.b16 %v240
      %v290 = vunpack.c.l.b16 %v241
      %v291 = vunpack.c.l.b16 %v242
      %v292 = vunpack.c.l.b16 %v243
      %v293 = vunpack.c.l.b16 %v244
      %v294 = vunpack.c.l.b16 %v245
      %v295 = vunpack.c.l.b16 %v246
      %v296 = vunpack.c.l.b16 %v247
      %v297 = vunpack.c.l.b16 %v248
      %v298 = vunpack.c.l.b16 %v249
      %v299 = vunpack.c.l.b16 %v250
      %v300 = vunpack.c.l.b16 %v251
      %v301 = vpack.c.b16 %v278, %v277
      %v302 = vpack.c.b16 %v280, %v279
      %v303 = vpack.c.b16 %v282, %v281
      %v304 = vpack.c.b16 %v284, %v283
      %v305 = vpack.c.b16 %v286, %v285
      %v306 = vpack.c.b16 %v288, %v287
      %v307 = vpack.c.b16 %v290, %v289
      %v308 = vpack.c.b16 %v292, %v291
      %v309 = vpack.c.b16 %v294, %v293
      %v310 = vpack.c.b16 %v296, %v295
      %v311 = vpack.c.b16 %v298, %v297
      %v312 = vpack.c.b16 %v300, %v299
      %vm325 = vcmask 523264
      %v327 = vsel %vm325, %v227, 0
      %329 = vmatprep.subr.bf16.mxu0 0
      %330 = vmatpush1.bf16.msra.mxu0 %v301
      %331 = vmatprep.subr.bf16.mxu0 0
      %332 = vmatpush1.bf16.msra.mxu0 %v302
      %333 = vmatprep.subr.bf16.mxu0 0
      %334 = vmatpush1.bf16.msra.mxu0 %v303
      %335 = vmatprep.subr.bf16.mxu0 0
      %336 = vmatpush1.bf16.msra.mxu0 %v304
      %337 = vmatprep.subr.bf16.mxu0 0
      %338 = vmatpush1.bf16.msra.mxu0 %v305
      %339 = vmatprep.subr.bf16.mxu0 0
      %340 = vmatpush1.bf16.msra.mxu0 %v306
      %341 = vmatprep.subr.bf16.mxu0 0
      %342 = vmatpush1.bf16.msra.mxu0 %v307
      %343 = vmatprep.subr.bf16.mxu0 0
      %344 = vmatpush1.bf16.msra.mxu0 %v308
      %345 = vmatprep.subr.bf16.mxu0 0
      %346 = vmatpush1.bf16.msra.mxu0 %v309
      %347 = vmatprep.subr.bf16.mxu0 0
      %348 = vmatpush1.bf16.msra.mxu0 %v310
      %349 = vmatprep.subr.bf16.mxu0 0
      %350 = vmatpush1.bf16.msra.mxu0 %v311
      %351 = vmatprep.subr.bf16.mxu0 0
      %352 = vmatpush1.bf16.msra.mxu0 %v312
      %353 = vmatprep.subr.bf16.mxu0 0
      %354 = vmatpush1.bf16.msra.mxu0 0
      %355 = vmatprep.subr.bf16.mxu0 0
      %356 = vmatpush1.bf16.msra.mxu0 0
      %357 = vmatprep.subr.bf16.mxu0 0
      %358 = vmatpush1.bf16.msra.mxu0 0
      %359 = vmatprep.subr.bf16.mxu0 0
      %360 = vmatpush1.bf16.msra.mxu0 0
      %361 = vmatprep.mubr.bf16.mxu0 %v327
      %362 = vmatmul.mubr.bf16.gmra.mrb[0].mxu0 %v226
      %v363 = vpop.f32.mrb[0].mxu0
      %v364 = vadd.f32 %v252, %v363
      %v365 = vpop.f32.mrb[0].mxu0
      %v366 = vpop.f32.mrb[0].mxu0
      %v367 = vpop.f32.mrb[0].mxu0
      %368 = vdwg.mxu0
      %v369 = vld [vmem:[%s3] sm:$0x1]
      %v370 = vld [vmem:[%s4] sm:$0x1]
      %vm371 = vcmask 258048
      %v372 = vsel %vm371, %v364, 0.0
      %373 = vadd.xlane.f32.xlu0 %v372
      %v374 = vpop.xlane.xlu0 %373
      %v375 = vrcp.pop 32.0
      %v376 = vmul.f32 %v374, %v375
      %v377 = vsub.f32 %v364, %v376
      %v378 = vmul.f32 %v377, %v377
      %v379 = vsel %vm371, %v378, 0.0
      %380 = vadd.xlane.f32.xlu0 %v379
      %v381 = vpop.xlane.xlu0 %380
      %v382 = vmul.f32 %v381, %v375
      %v383 = vadd.f32 %v382, 1e-05
      %v384 = vrsqrt.pop %v383
      %v385 = vmul.f32 %v377, %v384
      %v387 = vlaneseq
      %v388 = vshrl.u32 %v387, 7
      %v389 = vsub.s32 0, %v388
      %v390 = vrot.slane %v369, %v389
      %v392 = vmul.f32 %v385, %v390
      %v394 = vlaneseq
      %v395 = vshrl.u32 %v394, 7
      %v396 = vsub.s32 0, %v395
      %v397 = vrot.slane %v370, %v396
      %v399 = vadd.f32 %v392, %v397
      %400 = vst.msk [vmem:[%s222] sm:$0x1f] %vm371, %v399
      %p401 = scmp.lt.s32.totalorder %s16, 1
      %s402 = scalar_select %p401, %s16, 1
      %s403 = smul.addr %s402, 8
      %s404 = scalar_lea.vmem %s5, %s403
      // Predicated region
      $region41: #{_lambda_.5} parent=39 // pred_check
        %p405 = pneg %p144
      $region42: #{_lambda_.5} parent=39 // pred_check_branch
        %407 = sbr.rel (%p405) target = $region44
      $region43: #{_lambda_.5} parent=39 // pred_region
        _
      $region44: #{_lambda_.5} parent=39 // pred_fallthru
        _
    $region40: #{_lambda_.5} parent=5 // pred_fallthru
      _
    %p408 = scmp.le.s32.totalorder 2, %s11
    // Predicated region
    $region45: #{_lambda_.5} parent=5 // pred_check
      %p409 = pneg %p408
    $region46: #{_lambda_.5} parent=5 // pred_check_branch
      %411 = sbr.rel (%p409) target = $region48
    $region47: #{_lambda_.5} parent=5 // pred_region
      %s412 = ssub.s32 %s11, 2
      // Predicated region
      $region49: #{_lambda_.5} parent=47 // pred_check
        %p413 = pneg %p150
      $region50: #{_lambda_.5} parent=47 // pred_check_branch
        %415 = sbr.rel (%p413) target = $region52
      $region51: #{_lambda_.5} parent=47 // pred_region
        %p416 = scmp.lt.s32.totalorder %s17, 1
        %s417 = scalar_select %p416, %s17, 1
        %s418 = smul.addr %s417, 8
        %s419 = scalar_lea.vmem %s5, %s418
      $region52: #{_lambda_.5} parent=47 // pred_fallthru
        _
    $region48: #{_lambda_.5} parent=5 // pred_fallthru
      _
  $region6: #{_lambda_.5} parent=0 // loop_footer
    %s15 = sadd.s32 1, %s11
  $region7: #{_lambda_.5} parent=0 // loop_footer_branch
    %10 = sbr.rel target = $region3
  $region8: #{_lambda_.5} parent=0 // loop_exit
    _

// kernel: _lambda_.7
$region0: #{_lambda_.7}
  #allocation0 [shape = 'u32[]', space=smem, size = 0x4, offset = 0x4, fixed_abs, tag = 'smem constant byte address 0x4 - core index']
  #allocation1 [shape = 'u32[144,128]{1,0:T(1,128)}', space=vmem, size = 0x12000, scoped, tag = 'internal scratch']
  #allocation2 [shape = 'f32[5,32]{1,0:T(8,128)}', space=vmem, size = 0x1000, scoped, tag = 'scratch operand']
  #allocation3 [shape = 'f32[5,32]{1,0:T(8,128)}', space=vmem, size = 0x1000, scoped, tag = 'scratch operand']
  %s0 = inlined_call_operand.vmem [shape: f32[2,5,32], index: 0, kind: input, shape index: {}]
  %s1 = inlined_call_operand.vmem [shape: f32[1,32], index: 1, kind: input, shape index: {}]
  %s2 = inlined_call_operand.vmem [shape: f32[1,32], index: 2, kind: input, shape index: {}]
  %s3 = inlined_call_operand.vmem [shape: bf16[32,64], index: 3, kind: input, shape index: {}]
  %s4 = inlined_call_operand.vmem [shape: f32[1,64], index: 4, kind: input, shape index: {}]
  %s5 = inlined_call_operand.vmem [shape: bf16[64,32], index: 5, kind: input, shape index: {}]
  %s6 = inlined_call_operand.vmem [shape: f32[1,32], index: 6, kind: input, shape index: {}]
  %s7 = inlined_call_operand.vmem [shape: f32[2,5,32], index: 7, kind: output, shape index: {}]
  %s8 = sld [smem:[#allocation0]]
  $region69: #{_lambda_.7} parent=0
    _
  %s10 = ssub.s32 1, %s8
  %s11 = scalar_select 0, %s10, %s8
  loop: start=0, step=1, limit=4
  $region2: #{_lambda_.7} parent=0 // loop_pre_header
    _
  $region3: #{_lambda_.7} parent=0 // loop_header
    %s13 = sphi 0, %s17
    %p14 = scmp.ge.s32.totalorder %s13, 4
    %s20 = sphi 0, %s32
    %s21 = sphi 0, %s28
    %s22 = sphi 0, %s20
    %s23 = sphi 0, %s21
    %s24 = sphi 0, %s22
    %s25 = sphi 0, %s23
    %s35 = sphi 0, %s37
    %s38 = sphi 0, %s35
    %s39 = sphi 0, %s38
    %s55 = sphi 0, %s39
    %s59 = sphi 0, %s59
    %s61 = sphi 0, %s59
    %s62 = sphi 0, %s61
    %s76 = sphi 0, %s62
    %s80 = sphi 0, %s80
    %s82 = sphi 0, %s80
    %s83 = sphi 0, %s82
    %s97 = sphi 0, %s83
    %s103 = sphi 0, %s105
    %s106 = sphi 0, %s103
    %s107 = sphi 0, %s106
    %s123 = sphi 0, %s107
    %s129 = sphi 0, %s131
    %s132 = sphi 0, %s129
    %s133 = sphi 0, %s132
    %s149 = sphi 0, %s133
    %s155 = sphi 0, %s157
    %s158 = sphi 0, %s155
    %s159 = sphi 0, %s158
    %s175 = sphi 0, %s159
    %s179 = sphi 0, %s179
    %s181 = sphi 0, %s179
    %s182 = sphi 0, %s181
    %s196 = sphi 0, %s182
    %s202 = sphi 0, %s204
    %s205 = sphi 0, %s202
    %s206 = sphi 0, %s205
    %s222 = sphi 0, %s206
  $region4: #{_lambda_.7} parent=0 // loop_header_branch
    %16 = sbr.rel (%p14) target = $region8
  $region5: #{_lambda_.7} parent=0 // loop_body
    %s18 = ssub.s32 %s13, 1
    %s19 = ssub.s32 %s13, 2
    %s26 = sadd.s32 1, %s21
    %p27 = scmp.ge.s32.totalorder %s26, 1
    %s28 = scalar_select %p27, 0, %s26
    %s29 = sadd.s32 1, %s20
    %s30 = scalar_select %p27, %s29, %s20
    %p31 = scmp.ge.s32.totalorder %s30, 2
    %s32 = scalar_select %p31, 0, %s30
    %s33 = ssub.s32 %s20, %s32
    %p34 = scmp.eq.s32.totalorder %s33, 0
    %s36 = sadd.s32 %s35, 1
    %s37 = scalar_select %p34, %s35, %s36
    %p40 = pneg %p34
    %p41 = scmp.eq.s32.totalorder %s13, 1
    %p42 = por %p40, %p41
    %p43 = scmp.ne.s32.totalorder %s35, %s38
    %p44 = scmp.eq.s32.totalorder %s13, 0
    %p45 = por %p43, %p44
    %p46 = scmp.ne.s32.totalorder %s35, %s38
    %p47 = scmp.eq.s32.totalorder %s18, 1
    %p48 = por %p46, %p47
    %p49 = scmp.ne.s32.totalorder %s38, %s39
    %p50 = scmp.eq.s32.totalorder %s18, 0
    %p51 = por %p49, %p50
    %p52 = scmp.ne.s32.totalorder %s38, %s39
    %p53 = scmp.eq.s32.totalorder %s19, 1
    %p54 = por %p52, %p53
    %p56 = scmp.ne.s32.totalorder %s39, %s55
    %p57 = scmp.eq.s32.totalorder %s19, 0
    %p58 = por %p56, %p57
    %s60 = sadd.s32 %s59, 1
    %p63 = scmp.eq.s32.totalorder %s13, 1
    %p64 = scmp.ne.s32.totalorder %s59, %s61
    %p65 = scmp.eq.s32.totalorder %s13, 0
    %p66 = por %p64, %p65
    %p67 = scmp.ne.s32.totalorder %s59, %s61
    %p68 = scmp.eq.s32.totalorder %s18, 1
    %p69 = por %p67, %p68
    %p70 = scmp.ne.s32.totalorder %s61, %s62
    %p71 = scmp.eq.s32.totalorder %s18, 0
    %p72 = por %p70, %p71
    %p73 = scmp.ne.s32.totalorder %s61, %s62
    %p74 = scmp.eq.s32.totalorder %s19, 1
    %p75 = por %p73, %p74
    %p77 = scmp.ne.s32.totalorder %s62, %s76
    %p78 = scmp.eq.s32.totalorder %s19, 0
    %p79 = por %p77, %p78
    %s81 = sadd.s32 %s80, 1
    %p84 = scmp.eq.s32.totalorder %s13, 1
    %p85 = scmp.ne.s32.totalorder %s80, %s82
    %p86 = scmp.eq.s32.totalorder %s13, 0
    %p87 = por %p85, %p86
    %p88 = scmp.ne.s32.totalorder %s80, %s82
    %p89 = scmp.eq.s32.totalorder %s18, 1
    %p90 = por %p88, %p89
    %p91 = scmp.ne.s32.totalorder %s82, %s83
    %p92 = scmp.eq.s32.totalorder %s18, 0
    %p93 = por %p91, %p92
    %p94 = scmp.ne.s32.totalorder %s82, %s83
    %p95 = scmp.eq.s32.totalorder %s19, 1
    %p96 = por %p94, %p95
    %p98 = scmp.ne.s32.totalorder %s83, %s97
    %p99 = scmp.eq.s32.totalorder %s19, 0
    %p100 = por %p98, %p99
    %s101 = ssub.s32 %s21, %s28
    %p102 = scmp.eq.s32.totalorder %s101, 0
    %s104 = sadd.s32 %s103, 1
    %s105 = scalar_select %p102, %s103, %s104
    %p108 = pneg %p102
    %p109 = scmp.eq.s32.totalorder %s13, 1
    %p110 = por %p108, %p109
    %p111 = scmp.ne.s32.totalorder %s103, %s106
    %p112 = scmp.eq.s32.totalorder %s13, 0
    %p113 = por %p111, %p112
    %p114 = scmp.ne.s32.totalorder %s103, %s106
    %p115 = scmp.eq.s32.totalorder %s18, 1
    %p116 = por %p114, %p115
    %p117 = scmp.ne.s32.totalorder %s106, %s107
    %p118 = scmp.eq.s32.totalorder %s18, 0
    %p119 = por %p117, %p118
    %p120 = scmp.ne.s32.totalorder %s106, %s107
    %p121 = scmp.eq.s32.totalorder %s19, 1
    %p122 = por %p120, %p121
    %p124 = scmp.ne.s32.totalorder %s107, %s123
    %p125 = scmp.eq.s32.totalorder %s19, 0
    %p126 = por %p124, %p125
    %s127 = ssub.s32 %s21, %s28
    %p128 = scmp.eq.s32.totalorder %s127, 0
    %s130 = sadd.s32 %s129, 1
    %s131 = scalar_select %p128, %s129, %s130
    %p134 = pneg %p128
    %p135 = scmp.eq.s32.totalorder %s13, 1
    %p136 = por %p134, %p135
    %p137 = scmp.ne.s32.totalorder %s129, %s132
    %p138 = scmp.eq.s32.totalorder %s13, 0
    %p139 = por %p137, %p138
    %p140 = scmp.ne.s32.totalorder %s129, %s132
    %p141 = scmp.eq.s32.totalorder %s18, 1
    %p142 = por %p140, %p141
    %p143 = scmp.ne.s32.totalorder %s132, %s133
    %p144 = scmp.eq.s32.totalorder %s18, 0
    %p145 = por %p143, %p144
    %p146 = scmp.ne.s32.totalorder %s132, %s133
    %p147 = scmp.eq.s32.totalorder %s19, 1
    %p148 = por %p146, %p147
    %p150 = scmp.ne.s32.totalorder %s133, %s149
    %p151 = scmp.eq.s32.totalorder %s19, 0
    %p152 = por %p150, %p151
    %s153 = ssub.s32 %s21, %s28
    %p154 = scmp.eq.s32.totalorder %s153, 0
    %s156 = sadd.s32 %s155, 1
    %s157 = scalar_select %p154, %s155, %s156
    %p160 = pneg %p154
    %p161 = scmp.eq.s32.totalorder %s13, 1
    %p162 = por %p160, %p161
    %p163 = scmp.ne.s32.totalorder %s155, %s158
    %p164 = scmp.eq.s32.totalorder %s13, 0
    %p165 = por %p163, %p164
    %p166 = scmp.ne.s32.totalorder %s155, %s158
    %p167 = scmp.eq.s32.totalorder %s18, 1
    %p168 = por %p166, %p167
    %p169 = scmp.ne.s32.totalorder %s158, %s159
    %p170 = scmp.eq.s32.totalorder %s18, 0
    %p171 = por %p169, %p170
    %p172 = scmp.ne.s32.totalorder %s158, %s159
    %p173 = scmp.eq.s32.totalorder %s19, 1
    %p174 = por %p172, %p173
    %p176 = scmp.ne.s32.totalorder %s159, %s175
    %p177 = scmp.eq.s32.totalorder %s19, 0
    %p178 = por %p176, %p177
    %s180 = sadd.s32 %s179, 1
    %p183 = scmp.eq.s32.totalorder %s13, 1
    %p184 = scmp.ne.s32.totalorder %s179, %s181
    %p185 = scmp.eq.s32.totalorder %s13, 0
    %p186 = por %p184, %p185
    %p187 = scmp.ne.s32.totalorder %s179, %s181
    %p188 = scmp.eq.s32.totalorder %s18, 1
    %p189 = por %p187, %p188
    %p190 = scmp.ne.s32.totalorder %s181, %s182
    %p191 = scmp.eq.s32.totalorder %s18, 0
    %p192 = por %p190, %p191
    %p193 = scmp.ne.s32.totalorder %s181, %s182
    %p194 = scmp.eq.s32.totalorder %s19, 1
    %p195 = por %p193, %p194
    %p197 = scmp.ne.s32.totalorder %s182, %s196
    %p198 = scmp.eq.s32.totalorder %s19, 0
    %p199 = por %p197, %p198
    %s200 = ssub.s32 %s20, %s32
    %p201 = scmp.eq.s32.totalorder %s200, 0
    %s203 = sadd.s32 %s202, 1
    %s204 = scalar_select %p201, %s202, %s203
    %p207 = pneg %p201
    %p208 = scmp.eq.s32.totalorder %s13, 1
    %p209 = por %p207, %p208
    %p210 = scmp.ne.s32.totalorder %s202, %s205
    %p211 = scmp.eq.s32.totalorder %s13, 0
    %p212 = por %p210, %p211
    %p213 = scmp.ne.s32.totalorder %s202, %s205
    %p214 = scmp.eq.s32.totalorder %s18, 1
    %p215 = por %p213, %p214
    %p216 = scmp.ne.s32.totalorder %s205, %s206
    %p217 = scmp.eq.s32.totalorder %s18, 0
    %p218 = por %p216, %p217
    %p219 = scmp.ne.s32.totalorder %s205, %s206
    %p220 = scmp.eq.s32.totalorder %s19, 1
    %p221 = por %p219, %p220
    %p223 = scmp.ne.s32.totalorder %s206, %s222
    %p224 = scmp.eq.s32.totalorder %s19, 0
    %p225 = por %p223, %p224
    %p226 = scmp.le.s32.totalorder 1, %s13
    %p227 = scmp.lt.s32.totalorder %s13, 3
    %p228 = pnand %p226, %p227
    %p229 = pneg %p228
    // Predicated region
    $region9: #{_lambda_.7} parent=5 // pred_check
      _
    $region10: #{_lambda_.7} parent=5 // pred_check_branch
      %231 = sbr.rel (%p228) target = $region12
    $region11: #{_lambda_.7} parent=5 // pred_region
      %s232 = ssub.s32 %s13, 1
      // Predicated region
      $region13: #{_lambda_.7} parent=11 // pred_check
        %p233 = pneg %p72
      $region14: #{_lambda_.7} parent=11 // pred_check_branch
        %235 = sbr.rel (%p233) target = $region16
      $region15: #{_lambda_.7} parent=11 // pred_region
        _
      $region16: #{_lambda_.7} parent=11 // pred_fallthru
        _
      // Predicated region
      $region17: #{_lambda_.7} parent=11 // pred_check
        %p236 = pneg %p93
      $region18: #{_lambda_.7} parent=11 // pred_check_branch
        %238 = sbr.rel (%p236) target = $region20
      $region19: #{_lambda_.7} parent=11 // pred_region
        _
      $region20: #{_lambda_.7} parent=11 // pred_fallthru
        _
      // Predicated region
      $region21: #{_lambda_.7} parent=11 // pred_check
        %p239 = pneg %p119
      $region22: #{_lambda_.7} parent=11 // pred_check_branch
        %241 = sbr.rel (%p239) target = $region24
      $region23: #{_lambda_.7} parent=11 // pred_region
        %p242 = scmp.lt.s32.totalorder %s23, 0
        %s243 = scalar_select %p242, %s23, 0
        %s244 = smul.addr %s243, 4
        %s245 = scalar_lea.vmem %s3, %s244
      $region24: #{_lambda_.7} parent=11 // pred_fallthru
        _
      // Predicated region
      $region25: #{_lambda_.7} parent=11 // pred_check
        %p246 = pneg %p145
      $region26: #{_lambda_.7} parent=11 // pred_check_branch
        %248 = sbr.rel (%p246) target = $region28
      $region27: #{_lambda_.7} parent=11 // pred_region
        %p249 = scmp.lt.s32.totalorder %s23, 0
        %s250 = scalar_select %p249, %s23, 0
        %s251 = scalar_lea.vmem %s4, %s250
      $region28: #{_lambda_.7} parent=11 // pred_fallthru
        _
      // Predicated region
      $region29: #{_lambda_.7} parent=11 // pred_check
        %p252 = pneg %p171
      $region30: #{_lambda_.7} parent=11 // pred_check_branch
        %254 = sbr.rel (%p252) target = $region32
      $region31: #{_lambda_.7} parent=11 // pred_region
        %s255 = smul.u32 8, %s23
        %p256 = scmp.lt.s32.totalorder %s255, 7
        %s257 = scalar_select %p256, %s255, 7
        %s258 = smul.addr %s257, 4
        %s259 = scalar_lea.vmem %s5, %s258
        %s260 = smul.u32 8, %s23
      $region32: #{_lambda_.7} parent=11 // pred_fallthru
        _
      // Predicated region
      $region33: #{_lambda_.7} parent=11 // pred_check
        %p261 = pneg %p192
      $region34: #{_lambda_.7} parent=11 // pred_check_branch
        %263 = sbr.rel (%p261) target = $region36
      $region35: #{_lambda_.7} parent=11 // pred_region
        _
      $region36: #{_lambda_.7} parent=11 // pred_fallthru
        _
    $region12: #{_lambda_.7} parent=5 // pred_fallthru
      _
    %p264 = scmp.lt.s32.totalorder %s13, 2
    // Predicated region
    $region37: #{_lambda_.7} parent=5 // pred_check
      %p265 = pneg %p264
    $region38: #{_lambda_.7} parent=5 // pred_check_branch
      %267 = sbr.rel (%p265) target = $region40
    $region39: #{_lambda_.7} parent=5 // pred_region
      // Predicated region
      $region41: #{_lambda_.7} parent=39 // pred_check
        %p268 = pneg %p45
      $region42: #{_lambda_.7} parent=39 // pred_check_branch
        %270 = sbr.rel (%p268) target = $region44
      $region43: #{_lambda_.7} parent=39 // pred_region
        %p271 = scmp.lt.s32.totalorder %s20, 1
        %s272 = scalar_select %p271, %s20, 1
        %s273 = smul.addr %s272, 8
        %s274 = scalar_lea.vmem %s0, %s273
      $region44: #{_lambda_.7} parent=39 // pred_fallthru
        _
    $region40: #{_lambda_.7} parent=5 // pred_fallthru
      _
    %p275 = scmp.le.s32.totalorder 1, %s13
    %p276 = scmp.lt.s32.totalorder %s13, 3
    %p277 = pnand %p275, %p276
    %p278 = pneg %p277
    // Predicated region
    $region45: #{_lambda_.7} parent=5 // pred_check
      _
    $region46: #{_lambda_.7} parent=5 // pred_check_branch
      %280 = sbr.rel (%p277) target = $region48
    $region47: #{_lambda_.7} parent=5 // pred_region
      %s281 = ssub.s32 %s13, 1
      %p282 = scmp.lt.s32.totalorder %s22, 1
      %s283 = scalar_select %p282, %s22, 1
      %s284 = smul.addr %s283, 8
      %s285 = scalar_lea.vmem %s0, %s284
      %p286 = pneg %p51
      %p287 = pneg %p48
      %p288 = pneg %p72
      %p289 = pneg %p69
      %p290 = pneg %p93
      %p291 = pneg %p90
      %p292 = scmp.lt.s32.totalorder %s23, 0
      %s293 = scalar_select %p292, %s23, 0
      %s294 = smul.addr %s293, 4
      %s295 = scalar_lea.vmem %s3, %s294
      %p296 = pneg %p119
      %p297 = pneg %p116
      %p298 = scmp.lt.s32.totalorder %s23, 0
      %s299 = scalar_select %p298, %s23, 0
      %s300 = scalar_lea.vmem %s4, %s299
      %p301 = pneg %p145
      %p302 = pneg %p142
      %s303 = smul.u32 8, %s23
      %p304 = scmp.lt.s32.totalorder %s303, 7
      %s305 = scalar_select %p304, %s303, 7
      %s306 = smul.addr %s305, 4
      %s307 = scalar_lea.vmem %s5, %s306
      %p308 = pneg %p171
      %p309 = pneg %p168
      %p310 = pneg %p192
      %p311 = pneg %p189
      %p312 = pneg %p218
      %p313 = pneg %p215
      %p314 = scmp.lt.s32.totalorder %s22, 1
      %s315 = scalar_select %p314, %s22, 1
      %s316 = smul.addr %s315, 8
      %s317 = scalar_lea.vmem %s7, %s316
      %p318 = scmp.lt.s32.totalorder %s22, 1
      %s319 = scalar_select %p318, %s22, 1
      %s320 = smul.addr %s319, 8
      %s321 = scalar_lea.vmem %s0, %s320
      %p322 = scmp.lt.s32.totalorder %s23, 0
      %s323 = scalar_select %p322, %s23, 0
      %s324 = smul.addr %s323, 4
      %s325 = scalar_lea.vmem %s3, %s324
      %p326 = scmp.lt.s32.totalorder %s23, 0
      %s327 = scalar_select %p326, %s23, 0
      %s328 = scalar_lea.vmem %s4, %s327
      %s329 = smul.u32 8, %s23
      %p330 = scmp.lt.s32.totalorder %s329, 7
      %s331 = scalar_select %p330, %s329, 7
      %s332 = smul.addr %s331, 4
      %s333 = scalar_lea.vmem %s5, %s332
      %s334 = smul.u32 8, %s23
      %p335 = scmp.lt.s32.totalorder %s22, 1
      %s336 = scalar_select %p335, %s22, 1
      %s337 = smul.addr %s336, 8
      %s338 = scalar_lea.vmem %s7, %s337
      %p340 = scmp.eq.s32.totalorder %s23, 0
      // Predicated region
      $region49: #{_lambda_.7} parent=47 // pred_check
        %p341 = pneg %p340
      $region50: #{_lambda_.7} parent=47 // pred_check_branch
        %343 = sbr.rel (%p341) target = $region52
      $region51: #{_lambda_.7} parent=47 // pred_region
        %v344 = vld [vmem:[%s321] sm:$0x1f]
        %v345 = vld [vmem:[%s1] sm:$0x1]
        %v346 = vld [vmem:[%s2] sm:$0x1]
        %vm347 = vcmask 258048
        %v348 = vsel %vm347, %v344, 0.0
        %349 = vadd.xlane.f32.xlu0 %v348
        %v350 = vpop.xlane.xlu0 %349
        %v351 = vrcp.pop 32.0
        %v352 = vmul.f32 %v350, %v351
        %v353 = vsub.f32 %v344, %v352
        %v354 = vmul.f32 %v353, %v353
        %v355 = vsel %vm347, %v354, 0.0
        %356 = vadd.xlane.f32.xlu0 %v355
        %v357 = vpop.xlane.xlu0 %356
        %v358 = vmul.f32 %v357, %v351
        %v359 = vadd.f32 %v358, 1e-05
        %v360 = vrsqrt.pop %v359
        %v361 = vmul.f32 %v353, %v360
        %v363 = vlaneseq
        %v364 = vshrl.u32 %v363, 7
        %v365 = vsub.s32 0, %v364
        %v366 = vrot.slane %v345, %v365
        %v368 = vmul.f32 %v361, %v366
        %v370 = vlaneseq
        %v371 = vshrl.u32 %v370, 7
        %v372 = vsub.s32 0, %v371
        %v373 = vrot.slane %v346, %v372
        %v375 = vadd.f32 %v368, %v373
        %376 = vst.msk [vmem:[#allocation2] sm:$0x1f] %vm347, %v375
        %v377 = vld [vmem:[%s6] sm:$0x1]
        %v379 = vlaneseq
        %v380 = vshrl.u32 %v379, 7
        %v381 = vsub.s32 0, %v380
        %v382 = vrot.slane %v377, %v381
        %v384 = vadd.f32 %v344, %v382
        %385 = vst.msk [vmem:[#allocation3] sm:$0x1f] %vm347, %v384
      $region52: #{_lambda_.7} parent=47 // pred_fallthru
        _
      %v386 = vld [vmem:[#allocation2] sm:$0x1f]
      %v387 = vpack.c.bf16 %v386, %v386
      %v388 = vld [vmem:[%s325] sm:$0xf]
      %v389 = vld [vmem:[%s325 + $0x4] sm:$0xf]
      %v390 = vld [vmem:[%s325 + $0x8] sm:$0xf]
      %v391 = vld [vmem:[%s325 + $0xc] sm:$0xf]
      %v392 = vld [vmem:[%s328] sm:$0x1]
      %v394 = vlaneseq
      %v395 = vshrl.u32 %v394, 7
      %v396 = vsub.s32 0, %v395
      %v397 = vrot.slane %v392, %v396
      %v403 = vunpack.c.l.b16 %v388
      %v404 = vunpack.c.l.b16 %v389
      %v405 = vunpack.c.l.b16 %v390
      %v406 = vunpack.c.l.b16 %v391
      %v407 = vpack.c.b16 %v404, %v403
      %v408 = vpack.c.b16 %v406, %v405
      %vm411 = vcmask 261120
      %v413 = vsel %vm411, %v387, 0
      %415 = vmatprep.subr.bf16.mxu0 0
      %416 = vmatpush1.bf16.msra.mxu0 %v407
      %417 = vmatprep.subr.bf16.mxu0 0
      %418 = vmatpush1.bf16.msra.mxu0 %v408
      %419 = vmatprep.subr.bf16.mxu0 0
      %420 = vmatpush1.bf16.msra.mxu0 0
      %421 = vmatprep.subr.bf16.mxu0 0
      %422 = vmatpush1.bf16.msra.mxu0 0
      %423 = vmatprep.subr.bf16.mxu0 0
      %424 = vmatpush1.bf16.msra.mxu0 0
      %425 = vmatprep.subr.bf16.mxu0 0
      %426 = vmatpush1.bf16.msra.mxu0 0
      %427 = vmatprep.subr.bf16.mxu0 0
      %428 = vmatpush1.bf16.msra.mxu0 0
      %429 = vmatprep.subr.bf16.mxu0 0
      %430 = vmatpush1.bf16.msra.mxu0 0
      %431 = vmatprep.subr.bf16.mxu0 0
      %432 = vmatpush1.bf16.msra.mxu0 0
      %433 = vmatprep.subr.bf16.mxu0 0
      %434 = vmatpush1.bf16.msra.mxu0 0
      %435 = vmatprep.subr.bf16.mxu0 0
      %436 = vmatpush1.bf16.msra.mxu0 0
      %437 = vmatprep.subr.bf16.mxu0 0
      %438 = vmatpush1.bf16.msra.mxu0 0
      %439 = vmatprep.subr.bf16.mxu0 0
      %440 = vmatpush1.bf16.msra.mxu0 0
      %441 = vmatprep.subr.bf16.mxu0 0
      %442 = vmatpush1.bf16.msra.mxu0 0
      %443 = vmatprep.subr.bf16.mxu0 0
      %444 = vmatpush1.bf16.msra.mxu0 0
      %445 = vmatprep.subr.bf16.mxu0 0
      %446 = vmatpush1.bf16.msra.mxu0 0
      %447 = vmatprep.mubr.bf16.mxu0 0
      %448 = vmatmul.mubr.bf16.gmra.mrb[0].mxu0 %v413
      %v449 = vpop.f32.mrb[0].mxu0
      %v450 = vadd.f32 %v397, %v449
      %v451 = vpop.f32.mrb[0].mxu0
      %v452 = vpop.f32.mrb[0].mxu0
      %v453 = vpop.f32.mrb[0].mxu0
      %454 = vdwg.mxu0
      %v455 = vmul.f32 %v450, 1.702
      %v456 = vxor.u32 %v455, 2147483648
      %v457 = vmul.f32 %v456, 1.442695
      %v458 = vpow.pop %v457
      %v459 = vadd.f32 %v458, 1.0
      %v460 = vrcp.pop %v459
      %v461 = vmul.f32 1.0, %v460
      %v462 = vmul.f32 %v450, %v461
      %v463 = vld [vmem:[#allocation3] sm:$0x1f]
      %v464 = vpack.c.bf16 %v462, %v462
      %v465 = vld [vmem:[%s333] sm:$0xf]
      %v466 = vld [vmem:[%s333 + $0x4] sm:$0xf]
      %v467 = vld [vmem:[%s333 + $0x8] sm:$0xf]
      %v468 = vld [vmem:[%s333 + $0xc] sm:$0xf]
      %v469 = vld [vmem:[%s333 + $0x10] sm:$0xf]
      %v470 = vld [vmem:[%s333 + $0x14] sm:$0xf]
      %v471 = vld [vmem:[%s333 + $0x18] sm:$0xf]
      %v472 = vld [vmem:[%s333 + $0x1c] sm:$0xf]
      %v481 = vunpack.c.l.b16 %v465
      %v482 = vunpack.c.l.b16 %v466
      %v483 = vunpack.c.l.b16 %v467
      %v484 = vunpack.c.l.b16 %v468
      %v485 = vunpack.c.l.b16 %v469
      %v486 = vunpack.c.l.b16 %v470
      %v487 = vunpack.c.l.b16 %v471
      %v488 = vunpack.c.l.b16 %v472
      %v489 = vpack.c.b16 %v482, %v481
      %v490 = vpack.c.b16 %v484, %v483
      %v491 = vpack.c.b16 %v486, %v485
      %v492 = vpack.c.b16 %v488, %v487
      %vm497 = vcmask 523264
      %v499 = vsel %vm497, %v464, 0
      %501 = vmatprep.subr.bf16.mxu0 0
      %502 = vmatpush1.bf16.msra.mxu0 %v489
      %503 = vmatprep.subr.bf16.mxu0 0
      %504 = vmatpush1.bf16.msra.mxu0 %v490
      %505 = vmatprep.subr.bf16.mxu0 0
      %506 = vmatpush1.bf16.msra.mxu0 %v491
      %507 = vmatprep.subr.bf16.mxu0 0
      %508 = vmatpush1.bf16.msra.mxu0 %v492
      %509 = vmatprep.subr.bf16.mxu0 0
      %510 = vmatpush1.bf16.msra.mxu0 0
      %511 = vmatprep.subr.bf16.mxu0 0
      %512 = vmatpush1.bf16.msra.mxu0 0
      %513 = vmatprep.subr.bf16.mxu0 0
      %514 = vmatpush1.bf16.msra.mxu0 0
      %515 = vmatprep.subr.bf16.mxu0 0
      %516 = vmatpush1.bf16.msra.mxu0 0
      %517 = vmatprep.subr.bf16.mxu0 0
      %518 = vmatpush1.bf16.msra.mxu0 0
      %519 = vmatprep.subr.bf16.mxu0 0
      %520 = vmatpush1.bf16.msra.mxu0 0
      %521 = vmatprep.subr.bf16.mxu0 0
      %522 = vmatpush1.bf16.msra.mxu0 0
      %523 = vmatprep.subr.bf16.mxu0 0
      %524 = vmatpush1.bf16.msra.mxu0 0
      %525 = vmatprep.subr.bf16.mxu0 0
      %526 = vmatpush1.bf16.msra.mxu0 0
      %527 = vmatprep.subr.bf16.mxu0 0
      %528 = vmatpush1.bf16.msra.mxu0 0
      %529 = vmatprep.subr.bf16.mxu0 0
      %530 = vmatpush1.bf16.msra.mxu0 0
      %531 = vmatprep.subr.bf16.mxu0 0
      %532 = vmatpush1.bf16.msra.mxu0 0
      %533 = vmatprep.mubr.bf16.mxu0 0
      %534 = vmatmul.mubr.bf16.gmra.mrb[0].mxu0 %v499
      %v535 = vpop.f32.mrb[0].mxu0
      %v536 = vadd.f32 0.0, %v535
      %v537 = vpop.f32.mrb[0].mxu0
      %v538 = vpop.f32.mrb[0].mxu0
      %v539 = vpop.f32.mrb[0].mxu0
      %540 = vdwg.mxu0
      %v541 = vadd.f32 %v463, %v536
      %vm542 = vcmask 258048
      %543 = vst.msk [vmem:[#allocation3] sm:$0x1f] %vm542, %v541
      // Predicated region
      $region53: #{_lambda_.7} parent=47 // pred_check
        %p544 = pneg %p340
      $region54: #{_lambda_.7} parent=47 // pred_check_branch
        %546 = sbr.rel (%p544) target = $region56
      $region55: #{_lambda_.7} parent=47 // pred_region
        %v547 = vld [vmem:[#allocation3] sm:$0x1f]
        %548 = vst.msk [vmem:[%s338] sm:$0x1f] %vm542, %v547
      $region56: #{_lambda_.7} parent=47 // pred_fallthru
        _
      %p549 = scmp.lt.s32.totalorder %s22, 1
      %s550 = scalar_select %p549, %s22, 1
      %s551 = smul.addr %s550, 8
      %s552 = scalar_lea.vmem %s7, %s551
      // Predicated region
      $region57: #{_lambda_.7} parent=47 // pred_check
        %p553 = pneg %p215
      $region58: #{_lambda_.7} parent=47 // pred_check_branch
        %555 = sbr.rel (%p553) target = $region60
      $region59: #{_lambda_.7} parent=47 // pred_region
        _
      $region60: #{_lambda_.7} parent=47 // pred_fallthru
        _
    $region48: #{_lambda_.7} parent=5 // pred_fallthru
      _
    %p556 = scmp.le.s32.totalorder 2, %s13
    // Predicated region
    $region61: #{_lambda_.7} parent=5 // pred_check
      %p557 = pneg %p556
    $region62: #{_lambda_.7} parent=5 // pred_check_branch
      %559 = sbr.rel (%p557) target = $region64
    $region63: #{_lambda_.7} parent=5 // pred_region
      %s560 = ssub.s32 %s13, 2
      // Predicated region
      $region65: #{_lambda_.7} parent=63 // pred_check
        %p561 = pneg %p221
      $region66: #{_lambda_.7} parent=63 // pred_check_branch
        %563 = sbr.rel (%p561) target = $region68
      $region67: #{_lambda_.7} parent=63 // pred_region
        %p564 = scmp.lt.s32.totalorder %s24, 1
        %s565 = scalar_select %p564, %s24, 1
        %s566 = smul.addr %s565, 8
        %s567 = scalar_lea.vmem %s7, %s566
      $region68: #{_lambda_.7} parent=63 // pred_fallthru
        _
    $region64: #{_lambda_.7} parent=5 // pred_fallthru
      _
  $region6: #{_lambda_.7} parent=0 // loop_footer
    %s17 = sadd.s32 1, %s13
  $region7: #{_lambda_.7} parent=0 // loop_footer_branch
    %12 = sbr.rel target = $region3
  $region8: #{_lambda_.7} parent=0 // loop_exit
    _

// kernel: _lambda_.6
$region0: #{_lambda_.6}
  #allocation0 [shape = 'u32[]', space=smem, size = 0x4, offset = 0x4, fixed_abs, tag = 'smem constant byte address 0x4 - core index']
  #allocation1 [shape = 'u32[144,128]{1,0:T(1,128)}', space=vmem, size = 0x12000, scoped, tag = 'internal scratch']
  #allocation2 [shape = 'f32[5,32]{1,0:T(8,128)}', space=vmem, size = 0x1000, scoped, tag = 'scratch operand']
  #allocation3 [shape = 'f32[5,32]{1,0:T(8,128)}', space=vmem, size = 0x1000, scoped, tag = 'scratch operand']
  %s0 = inlined_call_operand.vmem [shape: f32[2,5,32], index: 0, kind: input, shape index: {}]
  %s1 = inlined_call_operand.vmem [shape: f32[1,32], index: 1, kind: input, shape index: {}]
  %s2 = inlined_call_operand.vmem [shape: f32[1,32], index: 2, kind: input, shape index: {}]
  %s3 = inlined_call_operand.vmem [shape: bf16[32,32], index: 3, kind: input, shape index: {}]
  %s4 = inlined_call_operand.vmem [shape: f32[1,32], index: 4, kind: input, shape index: {}]
  %s5 = inlined_call_operand.vmem [shape: bf16[32,32], index: 5, kind: input, shape index: {}]
  %s6 = inlined_call_operand.vmem [shape: f32[1,32], index: 6, kind: input, shape index: {}]
  %s7 = inlined_call_operand.vmem [shape: bf16[32,32], index: 7, kind: input, shape index: {}]
  %s8 = inlined_call_operand.vmem [shape: f32[1,32], index: 8, kind: input, shape index: {}]
  %s9 = inlined_call_operand.vmem [shape: bf16[32,32], index: 9, kind: input, shape index: {}]
  %s10 = inlined_call_operand.vmem [shape: f32[1,32], index: 10, kind: input, shape index: {}]
  %s11 = inlined_call_operand.vmem [shape: f32[2,5,32], index: 11, kind: output, shape index: {}]
  %s12 = sld [smem:[#allocation0]]
  $region85: #{_lambda_.6} parent=0
    _
  %s14 = ssub.s32 1, %s12
  %s15 = scalar_select 0, %s14, %s12
  loop: start=0, step=1, limit=4
  $region2: #{_lambda_.6} parent=0 // loop_pre_header
    _
  $region3: #{_lambda_.6} parent=0 // loop_header
    %s17 = sphi 0, %s21
    %p18 = scmp.ge.s32.totalorder %s17, 4
    %s24 = sphi 0, %s36
    %s25 = sphi 0, %s32
    %s26 = sphi 0, %s24
    %s27 = sphi 0, %s25
    %s28 = sphi 0, %s26
    %s29 = sphi 0, %s27
    %s39 = sphi 0, %s41
    %s42 = sphi 0, %s39
    %s43 = sphi 0, %s42
    %s59 = sphi 0, %s43
    %s63 = sphi 0, %s63
    %s65 = sphi 0, %s63
    %s66 = sphi 0, %s65
    %s80 = sphi 0, %s66
    %s84 = sphi 0, %s84
    %s86 = sphi 0, %s84
    %s87 = sphi 0, %s86
    %s101 = sphi 0, %s87
    %s107 = sphi 0, %s109
    %s110 = sphi 0, %s107
    %s111 = sphi 0, %s110
    %s127 = sphi 0, %s111
    %s133 = sphi 0, %s135
    %s136 = sphi 0, %s133
    %s137 = sphi 0, %s136
    %s153 = sphi 0, %s137
    %s159 = sphi 0, %s161
    %s162 = sphi 0, %s159
    %s163 = sphi 0, %s162
    %s179 = sphi 0, %s163
    %s185 = sphi 0, %s187
    %s188 = sphi 0, %s185
    %s189 = sphi 0, %s188
    %s205 = sphi 0, %s189
    %s211 = sphi 0, %s213
    %s214 = sphi 0, %s211
    %s215 = sphi 0, %s214
    %s231 = sphi 0, %s215
    %s237 = sphi 0, %s239
    %s240 = sphi 0, %s237
    %s241 = sphi 0, %s240
    %s257 = sphi 0, %s241
    %s263 = sphi 0, %s265
    %s266 = sphi 0, %s263
    %s267 = sphi 0, %s266
    %s283 = sphi 0, %s267
    %s287 = sphi 0, %s287
    %s289 = sphi 0, %s287
    %s290 = sphi 0, %s289
    %s304 = sphi 0, %s290
    %s310 = sphi 0, %s312
    %s313 = sphi 0, %s310
    %s314 = sphi 0, %s313
    %s330 = sphi 0, %s314
  $region4: #{_lambda_.6} parent=0 // loop_header_branch
    %20 = sbr.rel (%p18) target = $region8
  $region5: #{_lambda_.6} parent=0 // loop_body
    %s22 = ssub.s32 %s17, 1
    %s23 = ssub.s32 %s17, 2
    %s30 = sadd.s32 1, %s25
    %p31 = scmp.ge.s32.totalorder %s30, 1
    %s32 = scalar_select %p31, 0, %s30
    %s33 = sadd.s32 1, %s24
    %s34 = scalar_select %p31, %s33, %s24
    %p35 = scmp.ge.s32.totalorder %s34, 2
    %s36 = scalar_select %p35, 0, %s34
    %s37 = ssub.s32 %s24, %s36
    %p38 = scmp.eq.s32.totalorder %s37, 0
    %s40 = sadd.s32 %s39, 1
    %s41 = scalar_select %p38, %s39, %s40
    %p44 = pneg %p38
    %p45 = scmp.eq.s32.totalorder %s17, 1
    %p46 = por %p44, %p45
    %p47 = scmp.ne.s32.totalorder %s39, %s42
    %p48 = scmp.eq.s32.totalorder %s17, 0
    %p49 = por %p47, %p48
    %p50 = scmp.ne.s32.totalorder %s39, %s42
    %p51 = scmp.eq.s32.totalorder %s22, 1
    %p52 = por %p50, %p51
    %p53 = scmp.ne.s32.totalorder %s42, %s43
    %p54 = scmp.eq.s32.totalorder %s22, 0
    %p55 = por %p53, %p54
    %p56 = scmp.ne.s32.totalorder %s42, %s43
    %p57 = scmp.eq.s32.totalorder %s23, 1
    %p58 = por %p56, %p57
    %p60 = scmp.ne.s32.totalorder %s43, %s59
    %p61 = scmp.eq.s32.totalorder %s23, 0
    %p62 = por %p60, %p61
    %s64 = sadd.s32 %s63, 1
    %p67 = scmp.eq.s32.totalorder %s17, 1
    %p68 = scmp.ne.s32.totalorder %s63, %s65
    %p69 = scmp.eq.s32.totalorder %s17, 0
    %p70 = por %p68, %p69
    %p71 = scmp.ne.s32.totalorder %s63, %s65
    %p72 = scmp.eq.s32.totalorder %s22, 1
    %p73 = por %p71, %p72
    %p74 = scmp.ne.s32.totalorder %s65, %s66
    %p75 = scmp.eq.s32.totalorder %s22, 0
    %p76 = por %p74, %p75
    %p77 = scmp.ne.s32.totalorder %s65, %s66
    %p78 = scmp.eq.s32.totalorder %s23, 1
    %p79 = por %p77, %p78
    %p81 = scmp.ne.s32.totalorder %s66, %s80
    %p82 = scmp.eq.s32.totalorder %s23, 0
    %p83 = por %p81, %p82
    %s85 = sadd.s32 %s84, 1
    %p88 = scmp.eq.s32.totalorder %s17, 1
    %p89 = scmp.ne.s32.totalorder %s84, %s86
    %p90 = scmp.eq.s32.totalorder %s17, 0
    %p91 = por %p89, %p90
    %p92 = scmp.ne.s32.totalorder %s84, %s86
    %p93 = scmp.eq.s32.totalorder %s22, 1
    %p94 = por %p92, %p93
    %p95 = scmp.ne.s32.totalorder %s86, %s87
    %p96 = scmp.eq.s32.totalorder %s22, 0
    %p97 = por %p95, %p96
    %p98 = scmp.ne.s32.totalorder %s86, %s87
    %p99 = scmp.eq.s32.totalorder %s23, 1
    %p100 = por %p98, %p99
    %p102 = scmp.ne.s32.totalorder %s87, %s101
    %p103 = scmp.eq.s32.totalorder %s23, 0
    %p104 = por %p102, %p103
    %s105 = ssub.s32 %s25, %s32
    %p106 = scmp.eq.s32.totalorder %s105, 0
    %s108 = sadd.s32 %s107, 1
    %s109 = scalar_select %p106, %s107, %s108
    %p112 = pneg %p106
    %p113 = scmp.eq.s32.totalorder %s17, 1
    %p114 = por %p112, %p113
    %p115 = scmp.ne.s32.totalorder %s107, %s110
    %p116 = scmp.eq.s32.totalorder %s17, 0
    %p117 = por %p115, %p116
    %p118 = scmp.ne.s32.totalorder %s107, %s110
    %p119 = scmp.eq.s32.totalorder %s22, 1
    %p120 = por %p118, %p119
    %p121 = scmp.ne.s32.totalorder %s110, %s111
    %p122 = scmp.eq.s32.totalorder %s22, 0
    %p123 = por %p121, %p122
    %p124 = scmp.ne.s32.totalorder %s110, %s111
    %p125 = scmp.eq.s32.totalorder %s23, 1
    %p126 = por %p124, %p125
    %p128 = scmp.ne.s32.totalorder %s111, %s127
    %p129 = scmp.eq.s32.totalorder %s23, 0
    %p130 = por %p128, %p129
    %s131 = ssub.s32 %s25, %s32
    %p132 = scmp.eq.s32.totalorder %s131, 0
    %s134 = sadd.s32 %s133, 1
    %s135 = scalar_select %p132, %s133, %s134
    %p138 = pneg %p132
    %p139 = scmp.eq.s32.totalorder %s17, 1
    %p140 = por %p138, %p139
    %p141 = scmp.ne.s32.totalorder %s133, %s136
    %p142 = scmp.eq.s32.totalorder %s17, 0
    %p143 = por %p141, %p142
    %p144 = scmp.ne.s32.totalorder %s133, %s136
    %p145 = scmp.eq.s32.totalorder %s22, 1
    %p146 = por %p144, %p145
    %p147 = scmp.ne.s32.totalorder %s136, %s137
    %p148 = scmp.eq.s32.totalorder %s22, 0
    %p149 = por %p147, %p148
    %p150 = scmp.ne.s32.totalorder %s136, %s137
    %p151 = scmp.eq.s32.totalorder %s23, 1
    %p152 = por %p150, %p151
    %p154 = scmp.ne.s32.totalorder %s137, %s153
    %p155 = scmp.eq.s32.totalorder %s23, 0
    %p156 = por %p154, %p155
    %s157 = ssub.s32 %s25, %s32
    %p158 = scmp.eq.s32.totalorder %s157, 0
    %s160 = sadd.s32 %s159, 1
    %s161 = scalar_select %p158, %s159, %s160
    %p164 = pneg %p158
    %p165 = scmp.eq.s32.totalorder %s17, 1
    %p166 = por %p164, %p165
    %p167 = scmp.ne.s32.totalorder %s159, %s162
    %p168 = scmp.eq.s32.totalorder %s17, 0
    %p169 = por %p167, %p168
    %p170 = scmp.ne.s32.totalorder %s159, %s162
    %p171 = scmp.eq.s32.totalorder %s22, 1
    %p172 = por %p170, %p171
    %p173 = scmp.ne.s32.totalorder %s162, %s163
    %p174 = scmp.eq.s32.totalorder %s22, 0
    %p175 = por %p173, %p174
    %p176 = scmp.ne.s32.totalorder %s162, %s163
    %p177 = scmp.eq.s32.totalorder %s23, 1
    %p178 = por %p176, %p177
    %p180 = scmp.ne.s32.totalorder %s163, %s179
    %p181 = scmp.eq.s32.totalorder %s23, 0
    %p182 = por %p180, %p181
    %s183 = ssub.s32 %s25, %s32
    %p184 = scmp.eq.s32.totalorder %s183, 0
    %s186 = sadd.s32 %s185, 1
    %s187 = scalar_select %p184, %s185, %s186
    %p190 = pneg %p184
    %p191 = scmp.eq.s32.totalorder %s17, 1
    %p192 = por %p190, %p191
    %p193 = scmp.ne.s32.totalorder %s185, %s188
    %p194 = scmp.eq.s32.totalorder %s17, 0
    %p195 = por %p193, %p194
    %p196 = scmp.ne.s32.totalorder %s185, %s188
    %p197 = scmp.eq.s32.totalorder %s22, 1
    %p198 = por %p196, %p197
    %p199 = scmp.ne.s32.totalorder %s188, %s189
    %p200 = scmp.eq.s32.totalorder %s22, 0
    %p201 = por %p199, %p200
    %p202 = scmp.ne.s32.totalorder %s188, %s189
    %p203 = scmp.eq.s32.totalorder %s23, 1
    %p204 = por %p202, %p203
    %p206 = scmp.ne.s32.totalorder %s189, %s205
    %p207 = scmp.eq.s32.totalorder %s23, 0
    %p208 = por %p206, %p207
    %s209 = ssub.s32 %s25, %s32
    %p210 = scmp.eq.s32.totalorder %s209, 0
    %s212 = sadd.s32 %s211, 1
    %s213 = scalar_select %p210, %s211, %s212
    %p216 = pneg %p210
    %p217 = scmp.eq.s32.totalorder %s17, 1
    %p218 = por %p216, %p217
    %p219 = scmp.ne.s32.totalorder %s211, %s214
    %p220 = scmp.eq.s32.totalorder %s17, 0
    %p221 = por %p219, %p220
    %p222 = scmp.ne.s32.totalorder %s211, %s214
    %p223 = scmp.eq.s32.totalorder %s22, 1
    %p224 = por %p222, %p223
    %p225 = scmp.ne.s32.totalorder %s214, %s215
    %p226 = scmp.eq.s32.totalorder %s22, 0
    %p227 = por %p225, %p226
    %p228 = scmp.ne.s32.totalorder %s214, %s215
    %p229 = scmp.eq.s32.totalorder %s23, 1
    %p230 = por %p228, %p229
    %p232 = scmp.ne.s32.totalorder %s215, %s231
    %p233 = scmp.eq.s32.totalorder %s23, 0
    %p234 = por %p232, %p233
    %s235 = ssub.s32 %s25, %s32
    %p236 = scmp.eq.s32.totalorder %s235, 0
    %s238 = sadd.s32 %s237, 1
    %s239 = scalar_select %p236, %s237, %s238
    %p242 = pneg %p236
    %p243 = scmp.eq.s32.totalorder %s17, 1
    %p244 = por %p242, %p243
    %p245 = scmp.ne.s32.totalorder %s237, %s240
    %p246 = scmp.eq.s32.totalorder %s17, 0
    %p247 = por %p245, %p246
    %p248 = scmp.ne.s32.totalorder %s237, %s240
    %p249 = scmp.eq.s32.totalorder %s22, 1
    %p250 = por %p248, %p249
    %p251 = scmp.ne.s32.totalorder %s240, %s241
    %p252 = scmp.eq.s32.totalorder %s22, 0
    %p253 = por %p251, %p252
    %p254 = scmp.ne.s32.totalorder %s240, %s241
    %p255 = scmp.eq.s32.totalorder %s23, 1
    %p256 = por %p254, %p255
    %p258 = scmp.ne.s32.totalorder %s241, %s257
    %p259 = scmp.eq.s32.totalorder %s23, 0
    %p260 = por %p258, %p259
    %s261 = ssub.s32 %s25, %s32
    %p262 = scmp.eq.s32.totalorder %s261, 0
    %s264 = sadd.s32 %s263, 1
    %s265 = scalar_select %p262, %s263, %s264
    %p268 = pneg %p262
    %p269 = scmp.eq.s32.totalorder %s17, 1
    %p270 = por %p268, %p269
    %p271 = scmp.ne.s32.totalorder %s263, %s266
    %p272 = scmp.eq.s32.totalorder %s17, 0
    %p273 = por %p271, %p272
    %p274 = scmp.ne.s32.totalorder %s263, %s266
    %p275 = scmp.eq.s32.totalorder %s22, 1
    %p276 = por %p274, %p275
    %p277 = scmp.ne.s32.totalorder %s266, %s267
    %p278 = scmp.eq.s32.totalorder %s22, 0
    %p279 = por %p277, %p278
    %p280 = scmp.ne.s32.totalorder %s266, %s267
    %p281 = scmp.eq.s32.totalorder %s23, 1
    %p282 = por %p280, %p281
    %p284 = scmp.ne.s32.totalorder %s267, %s283
    %p285 = scmp.eq.s32.totalorder %s23, 0
    %p286 = por %p284, %p285
    %s288 = sadd.s32 %s287, 1
    %p291 = scmp.eq.s32.totalorder %s17, 1
    %p292 = scmp.ne.s32.totalorder %s287, %s289
    %p293 = scmp.eq.s32.totalorder %s17, 0
    %p294 = por %p292, %p293
    %p295 = scmp.ne.s32.totalorder %s287, %s289
    %p296 = scmp.eq.s32.totalorder %s22, 1
    %p297 = por %p295, %p296
    %p298 = scmp.ne.s32.totalorder %s289, %s290
    %p299 = scmp.eq.s32.totalorder %s22, 0
    %p300 = por %p298, %p299
    %p301 = scmp.ne.s32.totalorder %s289, %s290
    %p302 = scmp.eq.s32.totalorder %s23, 1
    %p303 = por %p301, %p302
    %p305 = scmp.ne.s32.totalorder %s290, %s304
    %p306 = scmp.eq.s32.totalorder %s23, 0
    %p307 = por %p305, %p306
    %s308 = ssub.s32 %s24, %s36
    %p309 = scmp.eq.s32.totalorder %s308, 0
    %s311 = sadd.s32 %s310, 1
    %s312 = scalar_select %p309, %s310, %s311
    %p315 = pneg %p309
    %p316 = scmp.eq.s32.totalorder %s17, 1
    %p317 = por %p315, %p316
    %p318 = scmp.ne.s32.totalorder %s310, %s313
    %p319 = scmp.eq.s32.totalorder %s17, 0
    %p320 = por %p318, %p319
    %p321 = scmp.ne.s32.totalorder %s310, %s313
    %p322 = scmp.eq.s32.totalorder %s22, 1
    %p323 = por %p321, %p322
    %p324 = scmp.ne.s32.totalorder %s313, %s314
    %p325 = scmp.eq.s32.totalorder %s22, 0
    %p326 = por %p324, %p325
    %p327 = scmp.ne.s32.totalorder %s313, %s314
    %p328 = scmp.eq.s32.totalorder %s23, 1
    %p329 = por %p327, %p328
    %p331 = scmp.ne.s32.totalorder %s314, %s330
    %p332 = scmp.eq.s32.totalorder %s23, 0
    %p333 = por %p331, %p332
    %p334 = scmp.le.s32.totalorder 1, %s17
    %p335 = scmp.lt.s32.totalorder %s17, 3
    %p336 = pnand %p334, %p335
    %p337 = pneg %p336
    // Predicated region
    $region9: #{_lambda_.6} parent=5 // pred_check
      _
    $region10: #{_lambda_.6} parent=5 // pred_check_branch
      %339 = sbr.rel (%p336) target = $region12
    $region11: #{_lambda_.6} parent=5 // pred_region
      %s340 = ssub.s32 %s17, 1
      // Predicated region
      $region13: #{_lambda_.6} parent=11 // pred_check
        %p341 = pneg %p76
      $region14: #{_lambda_.6} parent=11 // pred_check_branch
        %343 = sbr.rel (%p341) target = $region16
      $region15: #{_lambda_.6} parent=11 // pred_region
        _
      $region16: #{_lambda_.6} parent=11 // pred_fallthru
        _
      // Predicated region
      $region17: #{_lambda_.6} parent=11 // pred_check
        %p344 = pneg %p97
      $region18: #{_lambda_.6} parent=11 // pred_check_branch
        %346 = sbr.rel (%p344) target = $region20
      $region19: #{_lambda_.6} parent=11 // pred_region
        _
      $region20: #{_lambda_.6} parent=11 // pred_fallthru
        _
      // Predicated region
      $region21: #{_lambda_.6} parent=11 // pred_check
        %p347 = pneg %p123
      $region22: #{_lambda_.6} parent=11 // pred_check_branch
        %349 = sbr.rel (%p347) target = $region24
      $region23: #{_lambda_.6} parent=11 // pred_region
        %p350 = scmp.lt.s32.totalorder %s27, 0
        %s351 = scalar_select %p350, %s27, 0
        %s352 = smul.addr %s351, 4
        %s353 = scalar_lea.vmem %s3, %s352
      $region24: #{_lambda_.6} parent=11 // pred_fallthru
        _
      // Predicated region
      $region25: #{_lambda_.6} parent=11 // pred_check
        %p354 = pneg %p149
      $region26: #{_lambda_.6} parent=11 // pred_check_branch
        %356 = sbr.rel (%p354) target = $region28
      $region27: #{_lambda_.6} parent=11 // pred_region
        %p357 = scmp.lt.s32.totalorder %s27, 0
        %s358 = scalar_select %p357, %s27, 0
        %s359 = scalar_lea.vmem %s4, %s358
      $region28: #{_lambda_.6} parent=11 // pred_fallthru
        _
      // Predicated region
      $region29: #{_lambda_.6} parent=11 // pred_check
        %p360 = pneg %p175
      $region30: #{_lambda_.6} parent=11 // pred_check_branch
        %362 = sbr.rel (%p360) target = $region32
      $region31: #{_lambda_.6} parent=11 // pred_region
        %p363 = scmp.lt.s32.totalorder %s27, 0
        %s364 = scalar_select %p363, %s27, 0
        %s365 = smul.addr %s364, 4
        %s366 = scalar_lea.vmem %s5, %s365
      $region32: #{_lambda_.6} parent=11 // pred_fallthru
        _
      // Predicated region
      $region33: #{_lambda_.6} parent=11 // pred_check
        %p367 = pneg %p201
      $region34: #{_lambda_.6} parent=11 // pred_check_branch
        %369 = sbr.rel (%p367) target = $region36
      $region35: #{_lambda_.6} parent=11 // pred_region
        %p370 = scmp.lt.s32.totalorder %s27, 0
        %s371 = scalar_select %p370, %s27, 0
        %s372 = scalar_lea.vmem %s6, %s371
      $region36: #{_lambda_.6} parent=11 // pred_fallthru
        _
      // Predicated region
      $region37: #{_lambda_.6} parent=11 // pred_check
        %p373 = pneg %p227
      $region38: #{_lambda_.6} parent=11 // pred_check_branch
        %375 = sbr.rel (%p373) target = $region40
      $region39: #{_lambda_.6} parent=11 // pred_region
        %p376 = scmp.lt.s32.totalorder %s27, 0
        %s377 = scalar_select %p376, %s27, 0
        %s378 = smul.addr %s377, 4
        %s379 = scalar_lea.vmem %s7, %s378
      $region40: #{_lambda_.6} parent=11 // pred_fallthru
        _
      // Predicated region
      $region41: #{_lambda_.6} parent=11 // pred_check
        %p380 = pneg %p253
      $region42: #{_lambda_.6} parent=11 // pred_check_branch
        %382 = sbr.rel (%p380) target = $region44
      $region43: #{_lambda_.6} parent=11 // pred_region
        %p383 = scmp.lt.s32.totalorder %s27, 0
        %s384 = scalar_select %p383, %s27, 0
        %s385 = scalar_lea.vmem %s8, %s384
      $region44: #{_lambda_.6} parent=11 // pred_fallthru
        _
      // Predicated region
      $region45: #{_lambda_.6} parent=11 // pred_check
        %p386 = pneg %p279
      $region46: #{_lambda_.6} parent=11 // pred_check_branch
        %388 = sbr.rel (%p386) target = $region48
      $region47: #{_lambda_.6} parent=11 // pred_region
        %s389 = smul.u32 4, %s27
        %p390 = scmp.lt.s32.totalorder %s389, 3
        %s391 = scalar_select %p390, %s389, 3
        %s392 = smul.addr %s391, 4
        %s393 = scalar_lea.vmem %s9, %s392
        %s394 = smul.u32 4, %s27
      $region48: #{_lambda_.6} parent=11 // pred_fallthru
        _
      // Predicated region
      $region49: #{_lambda_.6} parent=11 // pred_check
        %p395 = pneg %p300
      $region50: #{_lambda_.6} parent=11 // pred_check_branch
        %397 = sbr.rel (%p395) target = $region52
      $region51: #{_lambda_.6} parent=11 // pred_region
        _
      $region52: #{_lambda_.6} parent=11 // pred_fallthru
        _
    $region12: #{_lambda_.6} parent=5 // pred_fallthru
      _
    %p398 = scmp.lt.s32.totalorder %s17, 2
    // Predicated region
    $region53: #{_lambda_.6} parent=5 // pred_check
      %p399 = pneg %p398
    $region54: #{_lambda_.6} parent=5 // pred_check_branch
      %401 = sbr.rel (%p399) target = $region56
    $region55: #{_lambda_.6} parent=5 // pred_region
      // Predicated region
      $region57: #{_lambda_.6} parent=55 // pred_check
        %p402 = pneg %p49
      $region58: #{_lambda_.6} parent=55 // pred_check_branch
        %404 = sbr.rel (%p402) target = $region60
      $region59: #{_lambda_.6} parent=55 // pred_region
        %p405 = scmp.lt.s32.totalorder %s24, 1
        %s406 = scalar_select %p405, %s24, 1
        %s407 = smul.addr %s406, 8
        %s408 = scalar_lea.vmem %s0, %s407
      $region60: #{_lambda_.6} parent=55 // pred_fallthru
        _
    $region56: #{_lambda_.6} parent=5 // pred_fallthru
      _
    %p409 = scmp.le.s32.totalorder 1, %s17
    %p410 = scmp.lt.s32.totalorder %s17, 3
    %p411 = pnand %p409, %p410
    %p412 = pneg %p411
    // Predicated region
    $region61: #{_lambda_.6} parent=5 // pred_check
      _
    $region62: #{_lambda_.6} parent=5 // pred_check_branch
      %414 = sbr.rel (%p411) target = $region64
    $region63: #{_lambda_.6} parent=5 // pred_region
      %s415 = ssub.s32 %s17, 1
      %p416 = scmp.lt.s32.totalorder %s26, 1
      %s417 = scalar_select %p416, %s26, 1
      %s418 = smul.addr %s417, 8
      %s419 = scalar_lea.vmem %s0, %s418
      %p420 = pneg %p55
      %p421 = pneg %p52
      %p422 = pneg %p76
      %p423 = pneg %p73
      %p424 = pneg %p97
      %p425 = pneg %p94
      %p426 = scmp.lt.s32.totalorder %s27, 0
      %s427 = scalar_select %p426, %s27, 0
      %s428 = smul.addr %s427, 4
      %s429 = scalar_lea.vmem %s3, %s428
      %p430 = pneg %p123
      %p431 = pneg %p120
      %p432 = scmp.lt.s32.totalorder %s27, 0
      %s433 = scalar_select %p432, %s27, 0
      %s434 = scalar_lea.vmem %s4, %s433
      %p435 = pneg %p149
      %p436 = pneg %p146
      %p437 = scmp.lt.s32.totalorder %s27, 0
      %s438 = scalar_select %p437, %s27, 0
      %s439 = smul.addr %s438, 4
      %s440 = scalar_lea.vmem %s5, %s439
      %p441 = pneg %p175
      %p442 = pneg %p172
      %p443 = scmp.lt.s32.totalorder %s27, 0
      %s444 = scalar_select %p443, %s27, 0
      %s445 = scalar_lea.vmem %s6, %s444
      %p446 = pneg %p201
      %p447 = pneg %p198
      %p448 = scmp.lt.s32.totalorder %s27, 0
      %s449 = scalar_select %p448, %s27, 0
      %s450 = smul.addr %s449, 4
      %s451 = scalar_lea.vmem %s7, %s450
      %p452 = pneg %p227
      %p453 = pneg %p224
      %p454 = scmp.lt.s32.totalorder %s27, 0
      %s455 = scalar_select %p454, %s27, 0
      %s456 = scalar_lea.vmem %s8, %s455
      %p457 = pneg %p253
      %p458 = pneg %p250
      %s459 = smul.u32 4, %s27
      %p460 = scmp.lt.s32.totalorder %s459, 3
      %s461 = scalar_select %p460, %s459, 3
      %s462 = smul.addr %s461, 4
      %s463 = scalar_lea.vmem %s9, %s462
      %p464 = pneg %p279
      %p465 = pneg %p276
      %p466 = pneg %p300
      %p467 = pneg %p297
      %p468 = pneg %p326
      %p469 = pneg %p323
      %p470 = scmp.lt.s32.totalorder %s26, 1
      %s471 = scalar_select %p470, %s26, 1
      %s472 = smul.addr %s471, 8
      %s473 = scalar_lea.vmem %s11, %s472
      %p474 = scmp.lt.s32.totalorder %s26, 1
      %s475 = scalar_select %p474, %s26, 1
      %s476 = smul.addr %s475, 8
      %s477 = scalar_lea.vmem %s0, %s476
      %p478 = scmp.lt.s32.totalorder %s27, 0
      %s479 = scalar_select %p478, %s27, 0
      %s480 = smul.addr %s479, 4
      %s481 = scalar_lea.vmem %s3, %s480
      %p482 = scmp.lt.s32.totalorder %s27, 0
      %s483 = scalar_select %p482, %s27, 0
      %s484 = scalar_lea.vmem %s4, %s483
      %p485 = scmp.lt.s32.totalorder %s27, 0
      %s486 = scalar_select %p485, %s27, 0
      %s487 = smul.addr %s486, 4
      %s488 = scalar_lea.vmem %s5, %s487
      %p489 = scmp.lt.s32.totalorder %s27, 0
      %s490 = scalar_select %p489, %s27, 0
      %s491 = scalar_lea.vmem %s6, %s490
      %p492 = scmp.lt.s32.totalorder %s27, 0
      %s493 = scalar_select %p492, %s27, 0
      %s494 = smul.addr %s493, 4
      %s495 = scalar_lea.vmem %s7, %s494
      %p496 = scmp.lt.s32.totalorder %s27, 0
      %s497 = scalar_select %p496, %s27, 0
      %s498 = scalar_lea.vmem %s8, %s497
      %s499 = smul.u32 4, %s27
      %p500 = scmp.lt.s32.totalorder %s499, 3
      %s501 = scalar_select %p500, %s499, 3
      %s502 = smul.addr %s501, 4
      %s503 = scalar_lea.vmem %s9, %s502
      %s504 = smul.u32 4, %s27
      %p505 = scmp.lt.s32.totalorder %s26, 1
      %s506 = scalar_select %p505, %s26, 1
      %s507 = smul.addr %s506, 8
      %s508 = scalar_lea.vmem %s11, %s507
      %p510 = scmp.eq.s32.totalorder %s27, 0
      // Predicated region
      $region65: #{_lambda_.6} parent=63 // pred_check
        %p511 = pneg %p510
      $region66: #{_lambda_.6} parent=63 // pred_check_branch
        %513 = sbr.rel (%p511) target = $region68
      $region67: #{_lambda_.6} parent=63 // pred_region
        %v514 = vld [vmem:[%s477] sm:$0x1f]
        %v515 = vld [vmem:[%s1] sm:$0x1]
        %v516 = vld [vmem:[%s2] sm:$0x1]
        %vm517 = vcmask 258048
        %v518 = vsel %vm517, %v514, 0.0
        %519 = vadd.xlane.f32.xlu0 %v518
        %v520 = vpop.xlane.xlu0 %519
        %v521 = vrcp.pop 32.0
        %v522 = vmul.f32 %v520, %v521
        %v523 = vsub.f32 %v514, %v522
        %v524 = vmul.f32 %v523, %v523
        %v525 = vsel %vm517, %v524, 0.0
        %526 = vadd.xlane.f32.xlu0 %v525
        %v527 = vpop.xlane.xlu0 %526
        %v528 = vmul.f32 %v527, %v521
        %v529 = vadd.f32 %v528, 1e-05
        %v530 = vrsqrt.pop %v529
        %v531 = vmul.f32 %v523, %v530
        %v533 = vlaneseq
        %v534 = vshrl.u32 %v533, 7
        %v535 = vsub.s32 0, %v534
        %v536 = vrot.slane %v515, %v535
        %v538 = vmul.f32 %v531, %v536
        %v540 = vlaneseq
        %v541 = vshrl.u32 %v540, 7
        %v542 = vsub.s32 0, %v541
        %v543 = vrot.slane %v516, %v542
        %v545 = vadd.f32 %v538, %v543
        %546 = vst.msk [vmem:[#allocation2] sm:$0x1f] %vm517, %v545
        %v547 = vld [vmem:[%s10] sm:$0x1]
        %v549 = vlaneseq
        %v550 = vshrl.u32 %v549, 7
        %v551 = vsub.s32 0, %v550
        %v552 = vrot.slane %v547, %v551
        %v554 = vadd.f32 %v514, %v552
        %555 = vst.msk [vmem:[#allocation3] sm:$0x1f] %vm517, %v554
      $region68: #{_lambda_.6} parent=63 // pred_fallthru
        _
      %v556 = vld [vmem:[#allocation2] sm:$0x1f]
      %v557 = vpack.c.bf16 %v556, %v556
      %v558 = vld [vmem:[%s481] sm:$0xf]
      %v559 = vld [vmem:[%s481 + $0x4] sm:$0xf]
      %v560 = vld [vmem:[%s481 + $0x8] sm:$0xf]
      %v561 = vld [vmem:[%s481 + $0xc] sm:$0xf]
      %v562 = vld [vmem:[%s484] sm:$0x1]
      %v564 = vlaneseq
      %v565 = vshrl.u32 %v564, 7
      %v566 = vsub.s32 0, %v565
      %v567 = vrot.slane %v562, %v566
      %v573 = vunpack.c.l.b16 %v558
      %v574 = vunpack.c.l.b16 %v559
      %v575 = vunpack.c.l.b16 %v560
      %v576 = vunpack.c.l.b16 %v561
      %v577 = vpack.c.b16 %v574, %v573
      %v578 = vpack.c.b16 %v576, %v575
      %vm581 = vcmask 261120
      %v583 = vsel %vm581, %v557, 0
      %585 = vmatprep.subr.bf16.mxu0 0
      %586 = vmatpush1.bf16.msra.mxu0 %v577
      %587 = vmatprep.subr.bf16.mxu0 0
      %588 = vmatpush1.bf16.msra.mxu0 %v578
      %589 = vmatprep.subr.bf16.mxu0 0
      %590 = vmatpush1.bf16.msra.mxu0 0
      %591 = vmatprep.subr.bf16.mxu0 0
      %592 = vmatpush1.bf16.msra.mxu0 0
      %593 = vmatprep.subr.bf16.mxu0 0
      %594 = vmatpush1.bf16.msra.mxu0 0
      %595 = vmatprep.subr.bf16.mxu0 0
      %596 = vmatpush1.bf16.msra.mxu0 0
      %597 = vmatprep.subr.bf16.mxu0 0
      %598 = vmatpush1.bf16.msra.mxu0 0
      %599 = vmatprep.subr.bf16.mxu0 0
      %600 = vmatpush1.bf16.msra.mxu0 0
      %601 = vmatprep.subr.bf16.mxu0 0
      %602 = vmatpush1.bf16.msra.mxu0 0
      %603 = vmatprep.subr.bf16.mxu0 0
      %604 = vmatpush1.bf16.msra.mxu0 0
      %605 = vmatprep.subr.bf16.mxu0 0
      %606 = vmatpush1.bf16.msra.mxu0 0
      %607 = vmatprep.subr.bf16.mxu0 0
      %608 = vmatpush1.bf16.msra.mxu0 0
      %609 = vmatprep.subr.bf16.mxu0 0
      %610 = vmatpush1.bf16.msra.mxu0 0
      %611 = vmatprep.subr.bf16.mxu0 0
      %612 = vmatpush1.bf16.msra.mxu0 0
      %613 = vmatprep.subr.bf16.mxu0 0
      %614 = vmatpush1.bf16.msra.mxu0 0
      %615 = vmatprep.subr.bf16.mxu0 0
      %616 = vmatpush1.bf16.msra.mxu0 0
      %617 = vmatprep.mubr.bf16.mxu0 0
      %618 = vmatmul.mubr.bf16.gmra.mrb[0].mxu0 %v583
      %v619 = vpop.f32.mrb[0].mxu0
      %v620 = vadd.f32 %v567, %v619
      %v621 = vpop.f32.mrb[0].mxu0
      %v622 = vpop.f32.mrb[0].mxu0
      %v623 = vpop.f32.mrb[0].mxu0
      %624 = vdwg.mxu0
      %v625 = vmul.f32 %v620, 0.35355338
      %v626 = vld [vmem:[%s488] sm:$0xf]
      %v627 = vld [vmem:[%s488 + $0x4] sm:$0xf]
      %v628 = vld [vmem:[%s488 + $0x8] sm:$0xf]
      %v629 = vld [vmem:[%s488 + $0xc] sm:$0xf]
      %v630 = vld [vmem:[%s491] sm:$0x1]
      %v632 = vlaneseq
      %v633 = vshrl.u32 %v632, 7
      %v634 = vsub.s32 0, %v633
      %v635 = vrot.slane %v630, %v634
      %v641 = vunpack.c.l.b16 %v626
      %v642 = vunpack.c.l.b16 %v627
      %v643 = vunpack.c.l.b16 %v628
      %v644 = vunpack.c.l.b16 %v629
      %v645 = vpack.c.b16 %v642, %v641
      %v646 = vpack.c.b16 %v644, %v643
      %649 = vmatprep.subr.bf16.mxu0 0
      %650 = vmatpush1.bf16.msra.mxu0 %v645
      %651 = vmatprep.subr.bf16.mxu0 0
      %652 = vmatpush1.bf16.msra.mxu0 %v646
      %653 = vmatprep.subr.bf16.mxu0 0
      %654 = vmatpush1.bf16.msra.mxu0 0
      %655 = vmatprep.subr.bf16.mxu0 0
      %656 = vmatpush1.bf16.msra.mxu0 0
      %657 = vmatprep.subr.bf16.mxu0 0
      %658 = vmatpush1.bf16.msra.mxu0 0
      %659 = vmatprep.subr.bf16.mxu0 0
      %660 = vmatpush1.bf16.msra.mxu0 0
      %661 = vmatprep.subr.bf16.mxu0 0
      %662 = vmatpush1.bf16.msra.mxu0 0
      %663 = vmatprep.subr.bf16.mxu0 0
      %664 = vmatpush1.bf16.msra.mxu0 0
      %665 = vmatprep.subr.bf16.mxu0 0
      %666 = vmatpush1.bf16.msra.mxu0 0
      %667 = vmatprep.subr.bf16.mxu0 0
      %668 = vmatpush1.bf16.msra.mxu0 0
      %669 = vmatprep.subr.bf16.mxu0 0
      %670 = vmatpush1.bf16.msra.mxu0 0
      %671 = vmatprep.subr.bf16.mxu0 0
      %672 = vmatpush1.bf16.msra.mxu0 0
      %673 = vmatprep.subr.bf16.mxu0 0
      %674 = vmatpush1.bf16.msra.mxu0 0
      %675 = vmatprep.subr.bf16.mxu0 0
      %676 = vmatpush1.bf16.msra.mxu0 0
      %677 = vmatprep.subr.bf16.mxu0 0
      %678 = vmatpush1.bf16.msra.mxu0 0
      %679 = vmatprep.subr.bf16.mxu0 0
      %680 = vmatpush1.bf16.msra.mxu0 0
      %681 = vmatprep.mubr.bf16.mxu0 0
      %682 = vmatmul.mubr.bf16.gmra.mrb[0].mxu0 %v583
      %v683 = vpop.f32.mrb[0].mxu0
      %v684 = vadd.f32 %v635, %v683
      %v685 = vpop.f32.mrb[0].mxu0
      %v686 = vpop.f32.mrb[0].mxu0
      %v687 = vpop.f32.mrb[0].mxu0
      %688 = vdwg.mxu0
      %v689 = vld [vmem:[%s495] sm:$0xf]
      %v690 = vld [vmem:[%s495 + $0x4] sm:$0xf]
      %v691 = vld [vmem:[%s495 + $0x8] sm:$0xf]
      %v692 = vld [vmem:[%s495 + $0xc] sm:$0xf]
      %v693 = vld [vmem:[%s498] sm:$0x1]
      %v695 = vlaneseq
      %v696 = vshrl.u32 %v695, 7
      %v697 = vsub.s32 0, %v696
      %v698 = vrot.slane %v693, %v697
      %v704 = vunpack.c.l.b16 %v689
      %v705 = vunpack.c.l.b16 %v690
      %v706 = vunpack.c.l.b16 %v691
      %v707 = vunpack.c.l.b16 %v692
      %v708 = vpack.c.b16 %v705, %v704
      %v709 = vpack.c.b16 %v707, %v706
      %712 = vmatprep.subr.bf16.mxu0 0
      %713 = vmatpush1.bf16.msra.mxu0 %v708
      %714 = vmatprep.subr.bf16.mxu0 0
      %715 = vmatpush1.bf16.msra.mxu0 %v709
      %716 = vmatprep.subr.bf16.mxu0 0
      %717 = vmatpush1.bf16.msra.mxu0 0
      %718 = vmatprep.subr.bf16.mxu0 0
      %719 = vmatpush1.bf16.msra.mxu0 0
      %720 = vmatprep.subr.bf16.mxu0 0
      %721 = vmatpush1.bf16.msra.mxu0 0
      %722 = vmatprep.subr.bf16.mxu0 0
      %723 = vmatpush1.bf16.msra.mxu0 0
      %724 = vmatprep.subr.bf16.mxu0 0
      %725 = vmatpush1.bf16.msra.mxu0 0
      %726 = vmatprep.subr.bf16.mxu0 0
      %727 = vmatpush1.bf16.msra.mxu0 0
      %728 = vmatprep.subr.bf16.mxu0 0
      %729 = vmatpush1.bf16.msra.mxu0 0
      %730 = vmatprep.subr.bf16.mxu0 0
      %731 = vmatpush1.bf16.msra.mxu0 0
      %732 = vmatprep.subr.bf16.mxu0 0
      %733 = vmatpush1.bf16.msra.mxu0 0
      %734 = vmatprep.subr.bf16.mxu0 0
      %735 = vmatpush1.bf16.msra.mxu0 0
      %736 = vmatprep.subr.bf16.mxu0 0
      %737 = vmatpush1.bf16.msra.mxu0 0
      %738 = vmatprep.subr.bf16.mxu0 0
      %739 = vmatpush1.bf16.msra.mxu0 0
      %740 = vmatprep.subr.bf16.mxu0 0
      %741 = vmatpush1.bf16.msra.mxu0 0
      %742 = vmatprep.subr.bf16.mxu0 0
      %743 = vmatpush1.bf16.msra.mxu0 0
      %744 = vmatprep.mubr.bf16.mxu0 0
      %745 = vmatmul.mubr.bf16.gmra.mrb[0].mxu0 %v583
      %v746 = vpop.f32.mrb[0].mxu0
      %v747 = vadd.f32 %v698, %v746
      %v748 = vpop.f32.mrb[0].mxu0
      %v749 = vpop.f32.mrb[0].mxu0
      %v750 = vpop.f32.mrb[0].mxu0
      %751 = vdwg.mxu0
      %v752 = vpack.c.bf16 %v625, %v625
      %v753 = vpack.c.bf16 %v684, %v684
      %v754 = vpack.c.bf16 %v747, %v747
      %vm755 = vcmask 64512
      %v757 = vsel %vm755, %v752, 0
      %v760 = vsel %vm755, %v753, 0
      %762 = vmatprep.subr.bf16.mxu0 0
      %763 = vmatpush1.bf16.xpose.msra.mxu0 %v760
      %764 = vmatprep.subr.bf16.mxu0 0
      %765 = vmatpush1.bf16.xpose.msra.mxu0 0
      %766 = vmatprep.subr.bf16.mxu0 0
      %767 = vmatpush1.bf16.xpose.msra.mxu0 0
      %768 = vmatprep.subr.bf16.mxu0 0
      %769 = vmatpush1.bf16.xpose.msra.mxu0 0
      %770 = vmatprep.subr.bf16.mxu0 0
      %771 = vmatpush1.bf16.xpose.msra.mxu0 0
      %772 = vmatprep.subr.bf16.mxu0 0
      %773 = vmatpush1.bf16.xpose.msra.mxu0 0
      %774 = vmatprep.subr.bf16.mxu0 0
      %775 = vmatpush1.bf16.xpose.msra.mxu0 0
      %776 = vmatprep.subr.bf16.mxu0 0
      %777 = vmatpush1.bf16.xpose.msra.mxu0 0
      %778 = vmatprep.subr.bf16.mxu0 0
      %779 = vmatpush1.bf16.xpose.msra.mxu0 0
      %780 = vmatprep.subr.bf16.mxu0 0
      %781 = vmatpush1.bf16.xpose.msra.mxu0 0
      %782 = vmatprep.subr.bf16.mxu0 0
      %783 = vmatpush1.bf16.xpose.msra.mxu0 0
      %784 = vmatprep.subr.bf16.mxu0 0
      %785 = vmatpush1.bf16.xpose.msra.mxu0 0
      %786 = vmatprep.subr.bf16.mxu0 0
      %787 = vmatpush1.bf16.xpose.msra.mxu0 0
      %788 = vmatprep.subr.bf16.mxu0 0
      %789 = vmatpush1.bf16.xpose.msra.mxu0 0
      %790 = vmatprep.subr.bf16.mxu0 0
      %791 = vmatpush1.bf16.xpose.msra.mxu0 0
      %792 = vmatprep.subr.bf16.mxu0 0
      %793 = vmatpush1.bf16.xpose.msra.mxu0 0
      %794 = vmatprep.mubr.bf16.mxu0 0
      %795 = vmatmul.mubr.bf16.gmra.mrb[0].mxu0 %v757
      %v796 = vpop.f32.mrb[0].mxu0
      %v797 = vadd.f32 0.0, %v796
      %v798 = vpop.f32.mrb[0].mxu0
      %v799 = vpop.f32.mrb[0].mxu0
      %v800 = vpop.f32.mrb[0].mxu0
      %801 = vdwg.mxu0
      %vm802 = vcmask 36864
      %v803 = vsel %vm802, %v797, -inf
      %804 = vmax.xlane.f32.xlu0 %v803
      %v805 = vpop.xlane.xlu0 %804
      %v806 = vsub.f32 %v797, %v805
      %v807 = vmul.f32 %v806, 1.442695
      %v808 = vpow.pop %v807
      %v809 = vsel %vm802, %v808, 0.0
      %810 = vadd.xlane.f32.xlu0 %v809
      %v811 = vpop.xlane.xlu0 %810
      %v812 = vrcp.pop %v811
      %v813 = vmul.f32 %v808, %v812
      %v814 = vpack.c.bf16 %v813, %v813
      %vm815 = vcmask 39936
      %v817 = vsel %vm815, %v814, 0
      %vm819 = vcmask 1041408
      %vm820 = vcmask 1042432
      %v821 = vsel %vm819, 4294967295, 65535
      %v822 = vsel %vm820, %v821, 0
      %v824 = vand.u32 %v754, %v822
      %826 = vmatprep.subr.bf16.mxu0 0
      %827 = vmatpush1.bf16.msra.mxu0 %v824
      %828 = vmatprep.subr.bf16.mxu0 0
      %829 = vmatpush1.bf16.msra.mxu0 0
      %830 = vmatprep.subr.bf16.mxu0 0
      %831 = vmatpush1.bf16.msra.mxu0 0
      %832 = vmatprep.subr.bf16.mxu0 0
      %833 = vmatpush1.bf16.msra.mxu0 0
      %834 = vmatprep.subr.bf16.mxu0 0
      %835 = vmatpush1.bf16.msra.mxu0 0
      %836 = vmatprep.subr.bf16.mxu0 0
      %837 = vmatpush1.bf16.msra.mxu0 0
      %838 = vmatprep.subr.bf16.mxu0 0
      %839 = vmatpush1.bf16.msra.mxu0 0
      %840 = vmatprep.subr.bf16.mxu0 0
      %841 = vmatpush1.bf16.msra.mxu0 0
      %842 = vmatprep.subr.bf16.mxu0 0
      %843 = vmatpush1.bf16.msra.mxu0 0
      %844 = vmatprep.subr.bf16.mxu0 0
      %845 = vmatpush1.bf16.msra.mxu0 0
      %846 = vmatprep.subr.bf16.mxu0 0
      %847 = vmatpush1.bf16.msra.mxu0 0
      %848 = vmatprep.subr.bf16.mxu0 0
      %849 = vmatpush1.bf16.msra.mxu0 0
      %850 = vmatprep.subr.bf16.mxu0 0
      %851 = vmatpush1.bf16.msra.mxu0 0
      %852 = vmatprep.subr.bf16.mxu0 0
      %853 = vmatpush1.bf16.msra.mxu0 0
      %854 = vmatprep.subr.bf16.mxu0 0
      %855 = vmatpush1.bf16.msra.mxu0 0
      %856 = vmatprep.subr.bf16.mxu0 0
      %857 = vmatpush1.bf16.msra.mxu0 0
      %858 = vmatprep.mubr.bf16.mxu0 0
      %859 = vmatmul.mubr.bf16.gmra.mrb[0].mxu0 %v817
      %v860 = vpop.f32.mrb[0].mxu0
      %v861 = vadd.f32 0.0, %v860
      %v862 = vpop.f32.mrb[0].mxu0
      %v863 = vpop.f32.mrb[0].mxu0
      %v864 = vpop.f32.mrb[0].mxu0
      %865 = vdwg.mxu0
      %867 = vrot.lane.b32.xlu0 %v752, 120
      %v868 = vpop.permute.xlu0 %867
      %870 = vrot.lane.b32.xlu0 %v753, 120
      %v871 = vpop.permute.xlu0 %870
      %v873 = vsel %vm755, %v868, 0
      %v876 = vsel %vm755, %v871, 0
      %878 = vmatprep.subr.bf16.mxu0 0
      %879 = vmatpush1.bf16.xpose.msra.mxu0 %v876
      %880 = vmatprep.subr.bf16.mxu0 0
      %881 = vmatpush1.bf16.xpose.msra.mxu0 0
      %882 = vmatprep.subr.bf16.mxu0 0
      %883 = vmatpush1.bf16.xpose.msra.mxu0 0
      %884 = vmatprep.subr.bf16.mxu0 0
      %885 = vmatpush1.bf16.xpose.msra.mxu0 0
      %886 = vmatprep.subr.bf16.mxu0 0
      %887 = vmatpush1.bf16.xpose.msra.mxu0 0
      %888 = vmatprep.subr.bf16.mxu0 0
      %889 = vmatpush1.bf16.xpose.msra.mxu0 0
      %890 = vmatprep.subr.bf16.mxu0 0
      %891 = vmatpush1.bf16.xpose.msra.mxu0 0
      %892 = vmatprep.subr.bf16.mxu0 0
      %893 = vmatpush1.bf16.xpose.msra.mxu0 0
      %894 = vmatprep.subr.bf16.mxu0 0
      %895 = vmatpush1.bf16.xpose.msra.mxu0 0
      %896 = vmatprep.subr.bf16.mxu0 0
      %897 = vmatpush1.bf16.xpose.msra.mxu0 0
      %898 = vmatprep.subr.bf16.mxu0 0
      %899 = vmatpush1.bf16.xpose.msra.mxu0 0
      %900 = vmatprep.subr.bf16.mxu0 0
      %901 = vmatpush1.bf16.xpose.msra.mxu0 0
      %902 = vmatprep.subr.bf16.mxu0 0
      %903 = vmatpush1.bf16.xpose.msra.mxu0 0
      %904 = vmatprep.subr.bf16.mxu0 0
      %905 = vmatpush1.bf16.xpose.msra.mxu0 0
      %906 = vmatprep.subr.bf16.mxu0 0
      %907 = vmatpush1.bf16.xpose.msra.mxu0 0
      %908 = vmatprep.subr.bf16.mxu0 0
      %909 = vmatpush1.bf16.xpose.msra.mxu0 0
      %910 = vmatprep.mubr.bf16.mxu0 0
      %911 = vmatmul.mubr.bf16.gmra.mrb[0].mxu0 %v873
      %v912 = vpop.f32.mrb[0].mxu0
      %v913 = vadd.f32 0.0, %v912
      %v914 = vpop.f32.mrb[0].mxu0
      %v915 = vpop.f32.mrb[0].mxu0
      %v916 = vpop.f32.mrb[0].mxu0
      %917 = vdwg.mxu0
      %v918 = vsel %vm802, %v913, -inf
      %919 = vmax.xlane.f32.xlu0 %v918
      %v920 = vpop.xlane.xlu0 %919
      %v921 = vsub.f32 %v913, %v920
      %v922 = vmul.f32 %v921, 1.442695
      %v923 = vpow.pop %v922
      %v924 = vsel %vm802, %v923, 0.0
      %925 = vadd.xlane.f32.xlu0 %v924
      %v926 = vpop.xlane.xlu0 %925
      %v927 = vrcp.pop %v926
      %v928 = vmul.f32 %v923, %v927
      %v929 = vpack.c.bf16 %v928, %v928
      %931 = vrot.lane.b32.xlu0 %v754, 120
      %v932 = vpop.permute.xlu0 %931
      %v934 = vsel %vm815, %v929, 0
      %v937 = vand.u32 %v932, %v822
      %939 = vmatprep.subr.bf16.mxu0 0
      %940 = vmatpush1.bf16.msra.mxu0 %v937
      %941 = vmatprep.subr.bf16.mxu0 0
      %942 = vmatpush1.bf16.msra.mxu0 0
      %943 = vmatprep.subr.bf16.mxu0 0
      %944 = vmatpush1.bf16.msra.mxu0 0
      %945 = vmatprep.subr.bf16.mxu0 0
      %946 = vmatpush1.bf16.msra.mxu0 0
      %947 = vmatprep.subr.bf16.mxu0 0
      %948 = vmatpush1.bf16.msra.mxu0 0
      %949 = vmatprep.subr.bf16.mxu0 0
      %950 = vmatpush1.bf16.msra.mxu0 0
      %951 = vmatprep.subr.bf16.mxu0 0
      %952 = vmatpush1.bf16.msra.mxu0 0
      %953 = vmatprep.subr.bf16.mxu0 0
      %954 = vmatpush1.bf16.msra.mxu0 0
      %955 = vmatprep.subr.bf16.mxu0 0
      %956 = vmatpush1.bf16.msra.mxu0 0
      %957 = vmatprep.subr.bf16.mxu0 0
      %958 = vmatpush1.bf16.msra.mxu0 0
      %959 = vmatprep.subr.bf16.mxu0 0
      %960 = vmatpush1.bf16.msra.mxu0 0
      %961 = vmatprep.subr.bf16.mxu0 0
      %962 = vmatpush1.bf16.msra.mxu0 0
      %963 = vmatprep.subr.bf16.mxu0 0
      %964 = vmatpush1.bf16.msra.mxu0 0
      %965 = vmatprep.subr.bf16.mxu0 0
      %966 = vmatpush1.bf16.msra.mxu0 0
      %967 = vmatprep.subr.bf16.mxu0 0
      %968 = vmatpush1.bf16.msra.mxu0 0
      %969 = vmatprep.subr.bf16.mxu0 0
      %970 = vmatpush1.bf16.msra.mxu0 0
      %971 = vmatprep.mubr.bf16.mxu0 0
      %972 = vmatmul.mubr.bf16.gmra.mrb[0].mxu0 %v934
      %v973 = vpop.f32.mrb[0].mxu0
      %v974 = vadd.f32 0.0, %v973
      %v975 = vpop.f32.mrb[0].mxu0
      %v976 = vpop.f32.mrb[0].mxu0
      %v977 = vpop.f32.mrb[0].mxu0
      %978 = vdwg.mxu0
      %979 = vrot.lane.b32.xlu0 %v752, 112
      %v980 = vpop.permute.xlu0 %979
      %981 = vrot.lane.b32.xlu0 %v753, 112
      %v982 = vpop.permute.xlu0 %981
      %v984 = vsel %vm755, %v980, 0
      %v987 = vsel %vm755, %v982, 0
      %989 = vmatprep.subr.bf16.mxu0 0
      %990 = vmatpush1.bf16.xpose.msra.mxu0 %v987
      %991 = vmatprep.subr.bf16.mxu0 0
      %992 = vmatpush1.bf16.xpose.msra.mxu0 0
      %993 = vmatprep.subr.bf16.mxu0 0
      %994 = vmatpush1.bf16.xpose.msra.mxu0 0
      %995 = vmatprep.subr.bf16.mxu0 0
      %996 = vmatpush1.bf16.xpose.msra.mxu0 0
      %997 = vmatprep.subr.bf16.mxu0 0
      %998 = vmatpush1.bf16.xpose.msra.mxu0 0
      %999 = vmatprep.subr.bf16.mxu0 0
      %1000 = vmatpush1.bf16.xpose.msra.mxu0 0
      %1001 = vmatprep.subr.bf16.mxu0 0
      %1002 = vmatpush1.bf16.xpose.msra.mxu0 0
      %1003 = vmatprep.subr.bf16.mxu0 0
      %1004 = vmatpush1.bf16.xpose.msra.mxu0 0
      %1005 = vmatprep.subr.bf16.mxu0 0
      %1006 = vmatpush1.bf16.xpose.msra.mxu0 0
      %1007 = vmatprep.subr.bf16.mxu0 0
      %1008 = vmatpush1.bf16.xpose.msra.mxu0 0
      %1009 = vmatprep.subr.bf16.mxu0 0
      %1010 = vmatpush1.bf16.xpose.msra.mxu0 0
      %1011 = vmatprep.subr.bf16.mxu0 0
      %1012 = vmatpush1.bf16.xpose.msra.mxu0 0
      %1013 = vmatprep.subr.bf16.mxu0 0
      %1014 = vmatpush1.bf16.xpose.msra.mxu0 0
      %1015 = vmatprep.subr.bf16.mxu0 0
      %1016 = vmatpush1.bf16.xpose.msra.mxu0 0
      %1017 = vmatprep.subr.bf16.mxu0 0
      %1018 = vmatpush1.bf16.xpose.msra.mxu0 0
      %1019 = vmatprep.subr.bf16.mxu0 0
      %1020 = vmatpush1.bf16.xpose.msra.mxu0 0
      %1021 = vmatprep.mubr.bf16.mxu0 0
      %1022 = vmatmul.mubr.bf16.gmra.mrb[0].mxu0 %v984
      %v1023 = vpop.f32.mrb[0].mxu0
      %v1024 = vadd.f32 0.0, %v1023
      %v1025 = vpop.f32.mrb[0].mxu0
      %v1026 = vpop.f32.mrb[0].mxu0
      %v1027 = vpop.f32.mrb[0].mxu0
      %1028 = vdwg.mxu0
      %v1029 = vsel %vm802, %v1024, -inf
      %1030 = vmax.xlane.f32.xlu0 %v1029
      %v1031 = vpop.xlane.xlu0 %1030
      %v1032 = vsub.f32 %v1024, %v1031
      %v1033 = vmul.f32 %v1032, 1.442695
      %v1034 = vpow.pop %v1033
      %v1035 = vsel %vm802, %v1034, 0.0
      %1036 = vadd.xlane.f32.xlu0 %v1035
      %v1037 = vpop.xlane.xlu0 %1036
      %v1038 = vrcp.pop %v1037
      %v1039 = vmul.f32 %v1034, %v1038
      %v1040 = vpack.c.bf16 %v1039, %v1039
      %1041 = vrot.lane.b32.xlu0 %v754, 112
      %v1042 = vpop.permute.xlu0 %1041
      %v1044 = vsel %vm815, %v1040, 0
      %v1047 = vand.u32 %v1042, %v822
      %1049 = vmatprep.subr.bf16.mxu0 0
      %1050 = vmatpush1.bf16.msra.mxu0 %v1047
      %1051 = vmatprep.subr.bf16.mxu0 0
      %1052 = vmatpush1.bf16.msra.mxu0 0
      %1053 = vmatprep.subr.bf16.mxu0 0
      %1054 = vmatpush1.bf16.msra.mxu0 0
      %1055 = vmatprep.subr.bf16.mxu0 0
      %1056 = vmatpush1.bf16.msra.mxu0 0
      %1057 = vmatprep.subr.bf16.mxu0 0
      %1058 = vmatpush1.bf16.msra.mxu0 0
      %1059 = vmatprep.subr.bf16.mxu0 0
      %1060 = vmatpush1.bf16.msra.mxu0 0
      %1061 = vmatprep.subr.bf16.mxu0 0
      %1062 = vmatpush1.bf16.msra.mxu0 0
      %1063 = vmatprep.subr.bf16.mxu0 0
      %1064 = vmatpush1.bf16.msra.mxu0 0
      %1065 = vmatprep.subr.bf16.mxu0 0
      %1066 = vmatpush1.bf16.msra.mxu0 0
      %1067 = vmatprep.subr.bf16.mxu0 0
      %1068 = vmatpush1.bf16.msra.mxu0 0
      %1069 = vmatprep.subr.bf16.mxu0 0
      %1070 = vmatpush1.bf16.msra.mxu0 0
      %1071 = vmatprep.subr.bf16.mxu0 0
      %1072 = vmatpush1.bf16.msra.mxu0 0
      %1073 = vmatprep.subr.bf16.mxu0 0
      %1074 = vmatpush1.bf16.msra.mxu0 0
      %1075 = vmatprep.subr.bf16.mxu0 0
      %1076 = vmatpush1.bf16.msra.mxu0 0
      %1077 = vmatprep.subr.bf16.mxu0 0
      %1078 = vmatpush1.bf16.msra.mxu0 0
      %1079 = vmatprep.subr.bf16.mxu0 0
      %1080 = vmatpush1.bf16.msra.mxu0 0
      %1081 = vmatprep.mubr.bf16.mxu0 0
      %1082 = vmatmul.mubr.bf16.gmra.mrb[0].mxu0 %v1044
      %v1083 = vpop.f32.mrb[0].mxu0
      %v1084 = vadd.f32 0.0, %v1083
      %v1085 = vpop.f32.mrb[0].mxu0
      %v1086 = vpop.f32.mrb[0].mxu0
      %v1087 = vpop.f32.mrb[0].mxu0
      %1088 = vdwg.mxu0
      %1089 = vrot.lane.b32.xlu0 %v752, 104
      %v1090 = vpop.permute.xlu0 %1089
      %1091 = vrot.lane.b32.xlu0 %v753, 104
      %v1092 = vpop.permute.xlu0 %1091
      %v1094 = vsel %vm755, %v1090, 0
      %v1097 = vsel %vm755, %v1092, 0
      %1099 = vmatprep.subr.bf16.mxu0 0
      %1100 = vmatpush1.bf16.xpose.msra.mxu0 %v1097
      %1101 = vmatprep.subr.bf16.mxu0 0
      %1102 = vmatpush1.bf16.xpose.msra.mxu0 0
      %1103 = vmatprep.subr.bf16.mxu0 0
      %1104 = vmatpush1.bf16.xpose.msra.mxu0 0
      %1105 = vmatprep.subr.bf16.mxu0 0
      %1106 = vmatpush1.bf16.xpose.msra.mxu0 0
      %1107 = vmatprep.subr.bf16.mxu0 0
      %1108 = vmatpush1.bf16.xpose.msra.mxu0 0
      %1109 = vmatprep.subr.bf16.mxu0 0
      %1110 = vmatpush1.bf16.xpose.msra.mxu0 0
      %1111 = vmatprep.subr.bf16.mxu0 0
      %1112 = vmatpush1.bf16.xpose.msra.mxu0 0
      %1113 = vmatprep.subr.bf16.mxu0 0
      %1114 = vmatpush1.bf16.xpose.msra.mxu0 0
      %1115 = vmatprep.subr.bf16.mxu0 0
      %1116 = vmatpush1.bf16.xpose.msra.mxu0 0
      %1117 = vmatprep.subr.bf16.mxu0 0
      %1118 = vmatpush1.bf16.xpose.msra.mxu0 0
      %1119 = vmatprep.subr.bf16.mxu0 0
      %1120 = vmatpush1.bf16.xpose.msra.mxu0 0
      %1121 = vmatprep.subr.bf16.mxu0 0
      %1122 = vmatpush1.bf16.xpose.msra.mxu0 0
      %1123 = vmatprep.subr.bf16.mxu0 0
      %1124 = vmatpush1.bf16.xpose.msra.mxu0 0
      %1125 = vmatprep.subr.bf16.mxu0 0
      %1126 = vmatpush1.bf16.xpose.msra.mxu0 0
      %1127 = vmatprep.subr.bf16.mxu0 0
      %1128 = vmatpush1.bf16.xpose.msra.mxu0 0
      %1129 = vmatprep.subr.bf16.mxu0 0
      %1130 = vmatpush1.bf16.xpose.msra.mxu0 0
      %1131 = vmatprep.mubr.bf16.mxu0 0
      %1132 = vmatmul.mubr.bf16.gmra.mrb[0].mxu0 %v1094
      %v1133 = vpop.f32.mrb[0].mxu0
      %v1134 = vadd.f32 0.0, %v1133
      %v1135 = vpop.f32.mrb[0].mxu0
      %v1136 = vpop.f32.mrb[0].mxu0
      %v1137 = vpop.f32.mrb[0].mxu0
      %1138 = vdwg.mxu0
      %v1139 = vsel %vm802, %v1134, -inf
      %1140 = vmax.xlane.f32.xlu0 %v1139
      %v1141 = vpop.xlane.xlu0 %1140
      %v1142 = vsub.f32 %v1134, %v1141
      %v1143 = vmul.f32 %v1142, 1.442695
      %v1144 = vpow.pop %v1143
      %v1145 = vsel %vm802, %v1144, 0.0
      %1146 = vadd.xlane.f32.xlu0 %v1145
      %v1147 = vpop.xlane.xlu0 %1146
      %v1148 = vrcp.pop %v1147
      %v1149 = vmul.f32 %v1144, %v1148
      %v1150 = vpack.c.bf16 %v1149, %v1149
      %1151 = vrot.lane.b32.xlu0 %v754, 104
      %v1152 = vpop.permute.xlu0 %1151
      %v1154 = vsel %vm815, %v1150, 0
      %v1157 = vand.u32 %v1152, %v822
      %1159 = vmatprep.subr.bf16.mxu0 0
      %1160 = vmatpush1.bf16.msra.mxu0 %v1157
      %1161 = vmatprep.subr.bf16.mxu0 0
      %1162 = vmatpush1.bf16.msra.mxu0 0
      %1163 = vmatprep.subr.bf16.mxu0 0
      %1164 = vmatpush1.bf16.msra.mxu0 0
      %1165 = vmatprep.subr.bf16.mxu0 0
      %1166 = vmatpush1.bf16.msra.mxu0 0
      %1167 = vmatprep.subr.bf16.mxu0 0
      %1168 = vmatpush1.bf16.msra.mxu0 0
      %1169 = vmatprep.subr.bf16.mxu0 0
      %1170 = vmatpush1.bf16.msra.mxu0 0
      %1171 = vmatprep.subr.bf16.mxu0 0
      %1172 = vmatpush1.bf16.msra.mxu0 0
      %1173 = vmatprep.subr.bf16.mxu0 0
      %1174 = vmatpush1.bf16.msra.mxu0 0
      %1175 = vmatprep.subr.bf16.mxu0 0
      %1176 = vmatpush1.bf16.msra.mxu0 0
      %1177 = vmatprep.subr.bf16.mxu0 0
      %1178 = vmatpush1.bf16.msra.mxu0 0
      %1179 = vmatprep.subr.bf16.mxu0 0
      %1180 = vmatpush1.bf16.msra.mxu0 0
      %1181 = vmatprep.subr.bf16.mxu0 0
      %1182 = vmatpush1.bf16.msra.mxu0 0
      %1183 = vmatprep.subr.bf16.mxu0 0
      %1184 = vmatpush1.bf16.msra.mxu0 0
      %1185 = vmatprep.subr.bf16.mxu0 0
      %1186 = vmatpush1.bf16.msra.mxu0 0
      %1187 = vmatprep.subr.bf16.mxu0 0
      %1188 = vmatpush1.bf16.msra.mxu0 0
      %1189 = vmatprep.subr.bf16.mxu0 0
      %1190 = vmatpush1.bf16.msra.mxu0 0
      %1191 = vmatprep.mubr.bf16.mxu0 0
      %1192 = vmatmul.mubr.bf16.gmra.mrb[0].mxu0 %v1154
      %v1193 = vpop.f32.mrb[0].mxu0
      %v1194 = vadd.f32 0.0, %v1193
      %v1195 = vpop.f32.mrb[0].mxu0
      %v1196 = vpop.f32.mrb[0].mxu0
      %v1197 = vpop.f32.mrb[0].mxu0
      %1198 = vdwg.mxu0
      %1200 = vrot.lane.b32.xlu0 %v974, 8
      %v1201 = vpop.permute.xlu0 %1200
      %1204 = vrot.lane.b32.xlu0 %v1084, 16
      %v1205 = vpop.permute.xlu0 %1204
      %1208 = vrot.lane.b32.xlu0 %v1194, 24
      %v1209 = vpop.permute.xlu0 %1208
      %v1211 = vsel %vm755, %v861, %v1201
      %vm1212 = vcmask 130048
      %v1213 = vsel %vm1212, %v1211, %v1205
      %vm1214 = vcmask 195584
      %v1215 = vsel %vm1214, %v1213, %v1209
      %v1216 = vld [vmem:[#allocation3] sm:$0x1f]
      %v1217 = vpack.c.bf16 %v1215, %v1215
      %v1218 = vld [vmem:[%s503] sm:$0xf]
      %v1219 = vld [vmem:[%s503 + $0x4] sm:$0xf]
      %v1220 = vld [vmem:[%s503 + $0x8] sm:$0xf]
      %v1221 = vld [vmem:[%s503 + $0xc] sm:$0xf]
      %v1226 = vunpack.c.l.b16 %v1218
      %v1227 = vunpack.c.l.b16 %v1219
      %v1228 = vunpack.c.l.b16 %v1220
      %v1229 = vunpack.c.l.b16 %v1221
      %v1230 = vpack.c.b16 %v1227, %v1226
      %v1231 = vpack.c.b16 %v1229, %v1228
      %v1235 = vsel %vm581, %v1217, 0
      %1237 = vmatprep.subr.bf16.mxu0 0
      %1238 = vmatpush1.bf16.msra.mxu0 %v1230
      %1239 = vmatprep.subr.bf16.mxu0 0
      %1240 = vmatpush1.bf16.msra.mxu0 %v1231
      %1241 = vmatprep.subr.bf16.mxu0 0
      %1242 = vmatpush1.bf16.msra.mxu0 0
      %1243 = vmatprep.subr.bf16.mxu0 0
      %1244 = vmatpush1.bf16.msra.mxu0 0
      %1245 = vmatprep.subr.bf16.mxu0 0
      %1246 = vmatpush1.bf16.msra.mxu0 0
      %1247 = vmatprep.subr.bf16.mxu0 0
      %1248 = vmatpush1.bf16.msra.mxu0 0
      %1249 = vmatprep.subr.bf16.mxu0 0
      %1250 = vmatpush1.bf16.msra.mxu0 0
      %1251 = vmatprep.subr.bf16.mxu0 0
      %1252 = vmatpush1.bf16.msra.mxu0 0
      %1253 = vmatprep.subr.bf16.mxu0 0
      %1254 = vmatpush1.bf16.msra.mxu0 0
      %1255 = vmatprep.subr.bf16.mxu0 0
      %1256 = vmatpush1.bf16.msra.mxu0 0
      %1257 = vmatprep.subr.bf16.mxu0 0
      %1258 = vmatpush1.bf16.msra.mxu0 0
      %1259 = vmatprep.subr.bf16.mxu0 0
      %1260 = vmatpush1.bf16.msra.mxu0 0
      %1261 = vmatprep.subr.bf16.mxu0 0
      %1262 = vmatpush1.bf16.msra.mxu0 0
      %1263 = vmatprep.subr.bf16.mxu0 0
      %1264 = vmatpush1.bf16.msra.mxu0 0
      %1265 = vmatprep.subr.bf16.mxu0 0
      %1266 = vmatpush1.bf16.msra.mxu0 0
      %1267 = vmatprep.subr.bf16.mxu0 0
      %1268 = vmatpush1.bf16.msra.mxu0 0
      %1269 = vmatprep.mubr.bf16.mxu0 0
      %1270 = vmatmul.mubr.bf16.gmra.mrb[0].mxu0 %v1235
      %v1271 = vpop.f32.mrb[0].mxu0
      %v1272 = vadd.f32 0.0, %v1271
      %v1273 = vpop.f32.mrb[0].mxu0
      %v1274 = vpop.f32.mrb[0].mxu0
      %v1275 = vpop.f32.mrb[0].mxu0
      %1276 = vdwg.mxu0
      %v1277 = vadd.f32 %v1216, %v1272
      %vm1278 = vcmask 258048
      %1279 = vst.msk [vmem:[#allocation3] sm:$0x1f] %vm1278, %v1277
      // Predicated region
      $region69: #{_lambda_.6} parent=63 // pred_check
        %p1280 = pneg %p510
      $region70: #{_lambda_.6} parent=63 // pred_check_branch
        %1282 = sbr.rel (%p1280) target = $region72
      $region71: #{_lambda_.6} parent=63 // pred_region
        %v1283 = vld [vmem:[#allocation3] sm:$0x1f]
        %1284 = vst.msk [vmem:[%s508] sm:$0x1f] %vm1278, %v1283
      $region72: #{_lambda_.6} parent=63 // pred_fallthru
        _
      %p1285 = scmp.lt.s32.totalorder %s26, 1
      %s1286 = scalar_select %p1285, %s26, 1
      %s1287 = smul.addr %s1286, 8
      %s1288 = scalar_lea.vmem %s11, %s1287
      // Predicated region
      $region73: #{_lambda_.6} parent=63 // pred_check
        %p1289 = pneg %p323
      $region74: #{_lambda_.6} parent=63 // pred_check_branch
        %1291 = sbr.rel (%p1289) target = $region76
      $region75: #{_lambda_.6} parent=63 // pred_region
        _
      $region76: #{_lambda_.6} parent=63 // pred_fallthru
        _
    $region64: #{_lambda_.6} parent=5 // pred_fallthru
      _
    %p1292 = scmp.le.s32.totalorder 2, %s17
    // Predicated region
    $region77: #{_lambda_.6} parent=5 // pred_check
      %p1293 = pneg %p1292
    $region78: #{_lambda_.6} parent=5 // pred_check_branch
      %1295 = sbr.rel (%p1293) target = $region80
    $region79: #{_lambda_.6} parent=5 // pred_region
      %s1296 = ssub.s32 %s17, 2
      // Predicated region
      $region81: #{_lambda_.6} parent=79 // pred_check
        %p1297 = pneg %p329
      $region82: #{_lambda_.6} parent=79 // pred_check_branch
        %1299 = sbr.rel (%p1297) target = $region84
      $region83: #{_lambda_.6} parent=79 // pred_region
        %p1300 = scmp.lt.s32.totalorder %s28, 1
        %s1301 = scalar_select %p1300, %s28, 1
        %s1302 = smul.addr %s1301, 8
        %s1303 = scalar_lea.vmem %s11, %s1302
      $region84: #{_lambda_.6} parent=79 // pred_fallthru
        _
    $region80: #{_lambda_.6} parent=5 // pred_fallthru
      _
  $region6: #{_lambda_.6} parent=0 // loop_footer
    %s21 = sadd.s32 1, %s17
  $region7: #{_lambda_.6} parent=0 // loop_footer_branch
    %16 = sbr.rel target = $region3
  $region8: #{_lambda_.6} parent=0 // loop_exit
    _

</llo_original>
